<compile_context>
chip_gen: v5e
topology: v5e:2x2
jax: 0.10.0
libtpu: 0.0.40
codegen_flags: <defaults>
</compile_context>

<pallas_src>
import jax
import jax.numpy as jnp
from jax.experimental import pallas as pl
from jax.experimental.pallas import tpu as pltpu


def _rdb_conv_in_kernel(xs_ref, w_ref, out_ref):
    """One (batch, row-strip) tile per grid step.

    xs_ref  : (1, 1, Cin, TH+2, W+2)  zero-halo'd input strip (NCHW-style)
    w_ref   : (G, 9*Cin + 1)          conv weights, taps flattened [dy,dx,c],
                                      last column = bias (folded into matmul)
    out_ref : (1, Cin+G, TH, W)       concat(x, relu(conv(x))) strip
    """
    Cin = xs_ref.shape[2]
    TH = out_ref.shape[2]
    W = out_ref.shape[3]

    # Pass-through channels [0, Cin): interior of the halo'd strip, written
    # directly into its channel range (no concatenate temporary).
    out_ref[0, 0:Cin, :, :] = xs_ref[0, 0, :, 1:1 + TH, 1:1 + W].astype(
        out_ref.dtype)

    w = w_ref[...].astype(jnp.float32)                 # (G, 9*Cin + 1)
    ones_row = jnp.ones((1, W), dtype=jnp.float32)     # bias row (hoisted)

    # Static unroll over the strip's output rows; each row is a single fused
    # im2col matmul with contraction depth K = 9*Cin (+1 bias row) and the
    # full W on the MXU output / lane axis.
    for h in range(TH):
        taps = []
        for dy in range(3):
            row = xs_ref[0, 0, :, h + dy, :].astype(jnp.float32)  # (Cin, W+2)
            for dx in range(3):
                taps.append(row[:, dx:dx + W])                    # (Cin, W)
        taps.append(ones_row)
        patch = jnp.concatenate(taps, axis=0)          # (9*Cin + 1, W)
        acc = jnp.dot(w, patch,                         # (G, W), MXU, f32 acc
                      preferred_element_type=jnp.float32)
        out_ref[0, Cin:, h, :] = jnp.maximum(acc, 0.0).astype(out_ref.dtype)


def _choose_tile_h(H, Cin, G, W, vmem_budget_bytes=20 * 1024 * 1024):
    """Pick a strip height TH.

    Constraints:
      * TH divides H and is a multiple of 8 (TPU sublane tiling) — or TH == H.
      * Double-buffered input + output strips stay under a conservative VMEM
        budget (sized for v7x's 32 MiB default scoped VMEM; also fine on
        v5e/v6e which have more).
      * Prefer >= 2 strips so the (N, R) grid has enough parallel iterations
        to pipeline DMAs and feed both TensorCores on v7x.
    """
    def bytes_per_step(th):
        in_b = Cin * (th + 2) * (W + 2) * 4
        out_b = (Cin + G) * th * W * 4
        return 2 * (in_b + out_b)            # double-buffered in + out blocks

    cands = [th for th in range(8, H + 1, 8) if H % th == 0]
    if not cands:
        return H                             # tiny / odd H: single strip
    fitting = [th for th in cands if bytes_per_step(th) <= vmem_budget_bytes]
    pool = fitting if fitting else [min(cands)]
    multi = [th for th in pool if H // th >= 2]
    return max(multi) if multi else max(pool)


@jax.jit
def setq_rdb_conv_in(x_nchw, weight_oihw, bias, i=0):
    """Pallas implementation of SetQ_RDB_Conv_in.forward(x, i).

    x_nchw      : (N, Cin, H, W) float32  (PyTorch NCHW layout)
    weight_oihw : (G, Cin, 3, 3) float32  (PyTorch conv weight layout)
    bias        : (G,)           float32
    i           : unused quant-step index (fp32 / 32-bit path)
    returns     : (N, Cin+G, H, W) float32
    """
    del i  # no-op for the 32-bit (non-quantized) path
    N, Cin, H, W = x_nchw.shape
    G = weight_oihw.shape[0]

    TH = _choose_tile_h(H, Cin, G, W)
    assert H % TH == 0
    R = H // TH

    # Halo'd row strips: (N, R, Cin, TH+2, W+2). The only wrapper-side data
    # movement (no layout transposes, no output post-processing).
    xpad = jnp.pad(x_nchw, ((0, 0), (0, 0), (1, 1), (1, 1)))
    xs = jnp.stack(
        [xpad[:, :, r * TH:r * TH + TH + 2, :] for r in range(R)], axis=1)

    # Weights flattened to (G, 9*Cin) in [dy, dx, c] tap order, with the bias
    # appended as one extra contraction column (matched by a row of ones in
    # the in-kernel patch matrix).
    w_flat = jnp.transpose(weight_oihw, (0, 2, 3, 1)).reshape(G, 9 * Cin)
    w_aug = jnp.concatenate([w_flat, bias.reshape(G, 1)], axis=1)

    out = pl.pallas_call(
        _rdb_conv_in_kernel,
        out_shape=jax.ShapeDtypeStruct((N, Cin + G, H, W), x_nchw.dtype),
        grid=(N, R),
        in_specs=[
            pl.BlockSpec((1, 1, Cin, TH + 2, W + 2),
                         lambda n, r: (n, r, 0, 0, 0)),
            pl.BlockSpec((G, 9 * Cin + 1), lambda n, r: (0, 0)),
        ],
        out_specs=pl.BlockSpec((1, Cin + G, TH, W),
                               lambda n, r: (n, 0, r, 0)),
        compiler_params=pltpu.CompilerParams(
            dimension_semantics=("parallel", "parallel")),
    )(xs, w_aug)

    return out


def _reference(x_nchw, weight_oihw, bias):
    """Pure-JAX reference (lax conv) for validation."""
    conv = jax.lax.conv_general_dilated(
        x_nchw, weight_oihw, window_strides=(1, 1), padding="SAME",
        dimension_numbers=("NCHW", "OIHW", "NCHW"))
    conv = jnp.maximum(conv + bias[None, :, None, None], 0.0)
    return jnp.concatenate([x_nchw, conv], axis=1)


if __name__ == "__main__":
    # Small deterministic problem: N=2, Cin=4, H=W=16, growRate G=8, kSize=3.
    key = jax.random.PRNGKey(0)
    kx, kw, kb = jax.random.split(key, 3)

    N, Cin, H, W, G = 2, 4, 16, 16, 8

    x = jax.random.normal(kx, (N, Cin, H, W), dtype=jnp.float32)
    weight = jax.random.normal(kw, (G, Cin, 3, 3), dtype=jnp.float32) * 0.1
    bias = jax.random.normal(kb, (G,), dtype=jnp.float32) * 0.01

    out = setq_rdb_conv_in(x, weight, bias, i=0)
    out = jax.block_until_ready(out)

    assert out.shape == (N, Cin + G, H, W), out.shape

    ref = _reference(x, weight, bias)
    assert jnp.allclose(out, ref, atol=1e-4, rtol=1e-4), "mismatch vs reference"

    print("KERNEL_OK")
</pallas_src>

<mosaic_0001>
module attributes {stable_mosaic.version = 11 : i64} {
  func.func @_rdb_conv_in_kernel(%arg0: i32, %arg1: i32, %arg2: memref<1x1x4x10x18xf32, #tpu.memory_space<vmem>>, %arg3: memref<8x37xf32, #tpu.memory_space<vmem>>, %arg4: memref<1x12x8x16xf32, #tpu.memory_space<vmem>>) attributes {dimension_semantics = [#tpu.dimension_semantics<parallel>, #tpu.dimension_semantics<parallel>], iteration_bounds = array<i64: 2, 2>, scalar_prefetch = 0 : i64, scratch_operands = 0 : i64, tpu.core_type = #tpu.core_type<tc>, window_params = [{transform_indices = @transform_0, window_bounds = array<i64: 1, 1, 4, 10, 18>}, {pipeline_mode = #tpu.pipeline_mode<synchronous>, transform_indices = @transform_1, window_bounds = array<i64: 8, 37>}, {transform_indices = @transform_2, window_bounds = array<i64: 1, 12, 8, 16>}]} {
    %c0 = arith.constant 0 : index
    %c0_0 = arith.constant 0 : index
    %c0_1 = arith.constant 0 : index
    %c1 = arith.constant 1 : index
    %c1_2 = arith.constant 1 : index
    %0 = vector.load %arg2[%c0, %c0_0, %c0_1, %c1, %c1_2] : memref<1x1x4x10x18xf32, #tpu.memory_space<vmem>>, vector<1x1x4x8x16xf32>
    %1 = vector.shape_cast %0 : vector<1x1x4x8x16xf32> to vector<4x8x16xf32>
    %c0_3 = arith.constant 0 : index
    %c0_4 = arith.constant 0 : index
    %c0_5 = arith.constant 0 : index
    %c0_6 = arith.constant 0 : index
    %2 = vector.load %arg4[%c0_3, %c0_4, %c0_5, %c0_6] : memref<1x12x8x16xf32, #tpu.memory_space<vmem>>, vector<1x4x8x16xf32>
    %3 = vector.shape_cast %2 : vector<1x4x8x16xf32> to vector<4x8x16xf32>
    %4 = vector.shape_cast %1 : vector<4x8x16xf32> to vector<1x4x8x16xf32>
    tpu.vector_store %arg4[%c0_3, %c0_4, %c0_5, %c0_6], %4 {strides = array<i32>} : memref<1x12x8x16xf32, #tpu.memory_space<vmem>>, vector<1x4x8x16xf32>,
    %c0_7 = arith.constant 0 : index
    %c0_8 = arith.constant 0 : index
    %5 = vector.load %arg3[%c0_7, %c0_8] : memref<8x37xf32, #tpu.memory_space<vmem>>, vector<8x37xf32>
    %cst = arith.constant 1.000000e+00 : f32
    %6 = vector.broadcast %cst : f32 to vector<1x16xf32>
    %c0_9 = arith.constant 0 : index
    %c0_10 = arith.constant 0 : index
    %c0_11 = arith.constant 0 : index
    %c0_12 = arith.constant 0 : index
    %c0_13 = arith.constant 0 : index
    %7 = vector.load %arg2[%c0_9, %c0_10, %c0_11, %c0_12, %c0_13] : memref<1x1x4x10x18xf32, #tpu.memory_space<vmem>>, vector<1x1x4x1x18xf32>
    %8 = vector.shape_cast %7 : vector<1x1x4x1x18xf32> to vector<4x18xf32>
    %9 = vector.extract_strided_slice %8 {offsets = [0, 0], sizes = [4, 16], strides = [1, 1]} : vector<4x18xf32> to vector<4x16xf32>
    %10 = vector.extract_strided_slice %8 {offsets = [0, 1], sizes = [4, 16], strides = [1, 1]} : vector<4x18xf32> to vector<4x16xf32>
    %11 = vector.extract_strided_slice %8 {offsets = [0, 2], sizes = [4, 16], strides = [1, 1]} : vector<4x18xf32> to vector<4x16xf32>
    %c0_14 = arith.constant 0 : index
    %c0_15 = arith.constant 0 : index
    %c0_16 = arith.constant 0 : index
    %c1_17 = arith.constant 1 : index
    %c0_18 = arith.constant 0 : index
    %12 = vector.load %arg2[%c0_14, %c0_15, %c0_16, %c1_17, %c0_18] : memref<1x1x4x10x18xf32, #tpu.memory_space<vmem>>, vector<1x1x4x1x18xf32>
    %13 = vector.shape_cast %12 : vector<1x1x4x1x18xf32> to vector<4x18xf32>
    %14 = vector.extract_strided_slice %13 {offsets = [0, 0], sizes = [4, 16], strides = [1, 1]} : vector<4x18xf32> to vector<4x16xf32>
    %15 = vector.extract_strided_slice %13 {offsets = [0, 1], sizes = [4, 16], strides = [1, 1]} : vector<4x18xf32> to vector<4x16xf32>
    %16 = vector.extract_strided_slice %13 {offsets = [0, 2], sizes = [4, 16], strides = [1, 1]} : vector<4x18xf32> to vector<4x16xf32>
    %c0_19 = arith.constant 0 : index
    %c0_20 = arith.constant 0 : index
    %c0_21 = arith.constant 0 : index
    %c2 = arith.constant 2 : index
    %c0_22 = arith.constant 0 : index
    %17 = vector.load %arg2[%c0_19, %c0_20, %c0_21, %c2, %c0_22] : memref<1x1x4x10x18xf32, #tpu.memory_space<vmem>>, vector<1x1x4x1x18xf32>
    %18 = vector.shape_cast %17 : vector<1x1x4x1x18xf32> to vector<4x18xf32>
    %19 = vector.extract_strided_slice %18 {offsets = [0, 0], sizes = [4, 16], strides = [1, 1]} : vector<4x18xf32> to vector<4x16xf32>
    %20 = vector.extract_strided_slice %18 {offsets = [0, 1], sizes = [4, 16], strides = [1, 1]} : vector<4x18xf32> to vector<4x16xf32>
    %21 = vector.extract_strided_slice %18 {offsets = [0, 2], sizes = [4, 16], strides = [1, 1]} : vector<4x18xf32> to vector<4x16xf32>
    %22 = tpu.concatenate %9, %10, %11, %14, %15, %16, %19, %20, %21, %6 in 0 : vector<4x16xf32>, vector<4x16xf32>, vector<4x16xf32>, vector<4x16xf32>, vector<4x16xf32>, vector<4x16xf32>, vector<4x16xf32>, vector<4x16xf32>, vector<4x16xf32>, vector<1x16xf32> -> vector<37x16xf32>
    %cst_23 = arith.constant dense<0.000000e+00> : vector<8x16xf32>
    %23 = tpu.matmul %5, %22, %cst_23 {dimension_numbers = #tpu.dot_dimension_numbers<[1], [0], [0], [1], [0, 0, 1, 1], [], []>} : vector<8x37xf32>, vector<37x16xf32>, vector<8x16xf32> -> vector<8x16xf32>
    %cst_24 = arith.constant 0.000000e+00 : f32
    %24 = vector.broadcast %cst_24 : f32 to vector<8x16xf32>
    %25 = arith.maximumf %23, %24 : vector<8x16xf32>
    %c0_25 = arith.constant 0 : index
    %c4 = arith.constant 4 : index
    %c0_26 = arith.constant 0 : index
    %c0_27 = arith.constant 0 : index
    %26 = vector.load %arg4[%c0_25, %c4, %c0_26, %c0_27] : memref<1x12x8x16xf32, #tpu.memory_space<vmem>>, vector<1x8x1x16xf32>
    %27 = vector.shape_cast %26 : vector<1x8x1x16xf32> to vector<8x16xf32>
    %28 = vector.shape_cast %25 : vector<8x16xf32> to vector<1x8x1x16xf32>
    tpu.vector_store %arg4[%c0_25, %c4, %c0_26, %c0_27], %28 {strides = array<i32>} : memref<1x12x8x16xf32, #tpu.memory_space<vmem>>, vector<1x8x1x16xf32>,
    %c0_28 = arith.constant 0 : index
    %c0_29 = arith.constant 0 : index
    %c0_30 = arith.constant 0 : index
    %c1_31 = arith.constant 1 : index
    %c0_32 = arith.constant 0 : index
    %29 = vector.load %arg2[%c0_28, %c0_29, %c0_30, %c1_31, %c0_32] : memref<1x1x4x10x18xf32, #tpu.memory_space<vmem>>, vector<1x1x4x1x18xf32>
    %30 = vector.shape_cast %29 : vector<1x1x4x1x18xf32> to vector<4x18xf32>
    %31 = vector.extract_strided_slice %30 {offsets = [0, 0], sizes = [4, 16], strides = [1, 1]} : vector<4x18xf32> to vector<4x16xf32>
    %32 = vector.extract_strided_slice %30 {offsets = [0, 1], sizes = [4, 16], strides = [1, 1]} : vector<4x18xf32> to vector<4x16xf32>
    %33 = vector.extract_strided_slice %30 {offsets = [0, 2], sizes = [4, 16], strides = [1, 1]} : vector<4x18xf32> to vector<4x16xf32>
    %c0_33 = arith.constant 0 : index
    %c0_34 = arith.constant 0 : index
    %c0_35 = arith.constant 0 : index
    %c2_36 = arith.constant 2 : index
    %c0_37 = arith.constant 0 : index
    %34 = vector.load %arg2[%c0_33, %c0_34, %c0_35, %c2_36, %c0_37] : memref<1x1x4x10x18xf32, #tpu.memory_space<vmem>>, vector<1x1x4x1x18xf32>
    %35 = vector.shape_cast %34 : vector<1x1x4x1x18xf32> to vector<4x18xf32>
    %36 = vector.extract_strided_slice %35 {offsets = [0, 0], sizes = [4, 16], strides = [1, 1]} : vector<4x18xf32> to vector<4x16xf32>
    %37 = vector.extract_strided_slice %35 {offsets = [0, 1], sizes = [4, 16], strides = [1, 1]} : vector<4x18xf32> to vector<4x16xf32>
    %38 = vector.extract_strided_slice %35 {offsets = [0, 2], sizes = [4, 16], strides = [1, 1]} : vector<4x18xf32> to vector<4x16xf32>
    %c0_38 = arith.constant 0 : index
    %c0_39 = arith.constant 0 : index
    %c0_40 = arith.constant 0 : index
    %c3 = arith.constant 3 : index
    %c0_41 = arith.constant 0 : index
    %39 = vector.load %arg2[%c0_38, %c0_39, %c0_40, %c3, %c0_41] : memref<1x1x4x10x18xf32, #tpu.memory_space<vmem>>, vector<1x1x4x1x18xf32>
    %40 = vector.shape_cast %39 : vector<1x1x4x1x18xf32> to vector<4x18xf32>
    %41 = vector.extract_strided_slice %40 {offsets = [0, 0], sizes = [4, 16], strides = [1, 1]} : vector<4x18xf32> to vector<4x16xf32>
    %42 = vector.extract_strided_slice %40 {offsets = [0, 1], sizes = [4, 16], strides = [1, 1]} : vector<4x18xf32> to vector<4x16xf32>
    %43 = vector.extract_strided_slice %40 {offsets = [0, 2], sizes = [4, 16], strides = [1, 1]} : vector<4x18xf32> to vector<4x16xf32>
    %44 = tpu.concatenate %31, %32, %33, %36, %37, %38, %41, %42, %43, %6 in 0 : vector<4x16xf32>, vector<4x16xf32>, vector<4x16xf32>, vector<4x16xf32>, vector<4x16xf32>, vector<4x16xf32>, vector<4x16xf32>, vector<4x16xf32>, vector<4x16xf32>, vector<1x16xf32> -> vector<37x16xf32>
    %cst_42 = arith.constant dense<0.000000e+00> : vector<8x16xf32>
    %45 = tpu.matmul %5, %44, %cst_42 {dimension_numbers = #tpu.dot_dimension_numbers<[1], [0], [0], [1], [0, 0, 1, 1], [], []>} : vector<8x37xf32>, vector<37x16xf32>, vector<8x16xf32> -> vector<8x16xf32>
    %cst_43 = arith.constant 0.000000e+00 : f32
    %46 = vector.broadcast %cst_43 : f32 to vector<8x16xf32>
    %47 = arith.maximumf %45, %46 : vector<8x16xf32>
    %c0_44 = arith.constant 0 : index
    %c4_45 = arith.constant 4 : index
    %c1_46 = arith.constant 1 : index
    %c0_47 = arith.constant 0 : index
    %48 = vector.load %arg4[%c0_44, %c4_45, %c1_46, %c0_47] : memref<1x12x8x16xf32, #tpu.memory_space<vmem>>, vector<1x8x1x16xf32>
    %49 = vector.shape_cast %48 : vector<1x8x1x16xf32> to vector<8x16xf32>
    %50 = vector.shape_cast %47 : vector<8x16xf32> to vector<1x8x1x16xf32>
    tpu.vector_store %arg4[%c0_44, %c4_45, %c1_46, %c0_47], %50 {strides = array<i32>} : memref<1x12x8x16xf32, #tpu.memory_space<vmem>>, vector<1x8x1x16xf32>,
    %c0_48 = arith.constant 0 : index
    %c0_49 = arith.constant 0 : index
    %c0_50 = arith.constant 0 : index
    %c2_51 = arith.constant 2 : index
    %c0_52 = arith.constant 0 : index
    %51 = vector.load %arg2[%c0_48, %c0_49, %c0_50, %c2_51, %c0_52] : memref<1x1x4x10x18xf32, #tpu.memory_space<vmem>>, vector<1x1x4x1x18xf32>
    %52 = vector.shape_cast %51 : vector<1x1x4x1x18xf32> to vector<4x18xf32>
    %53 = vector.extract_strided_slice %52 {offsets = [0, 0], sizes = [4, 16], strides = [1, 1]} : vector<4x18xf32> to vector<4x16xf32>
    %54 = vector.extract_strided_slice %52 {offsets = [0, 1], sizes = [4, 16], strides = [1, 1]} : vector<4x18xf32> to vector<4x16xf32>
    %55 = vector.extract_strided_slice %52 {offsets = [0, 2], sizes = [4, 16], strides = [1, 1]} : vector<4x18xf32> to vector<4x16xf32>
    %c0_53 = arith.constant 0 : index
    %c0_54 = arith.constant 0 : index
    %c0_55 = arith.constant 0 : index
    %c3_56 = arith.constant 3 : index
    %c0_57 = arith.constant 0 : index
    %56 = vector.load %arg2[%c0_53, %c0_54, %c0_55, %c3_56, %c0_57] : memref<1x1x4x10x18xf32, #tpu.memory_space<vmem>>, vector<1x1x4x1x18xf32>
    %57 = vector.shape_cast %56 : vector<1x1x4x1x18xf32> to vector<4x18xf32>
    %58 = vector.extract_strided_slice %57 {offsets = [0, 0], sizes = [4, 16], strides = [1, 1]} : vector<4x18xf32> to vector<4x16xf32>
    %59 = vector.extract_strided_slice %57 {offsets = [0, 1], sizes = [4, 16], strides = [1, 1]} : vector<4x18xf32> to vector<4x16xf32>
    %60 = vector.extract_strided_slice %57 {offsets = [0, 2], sizes = [4, 16], strides = [1, 1]} : vector<4x18xf32> to vector<4x16xf32>
    %c0_58 = arith.constant 0 : index
    %c0_59 = arith.constant 0 : index
    %c0_60 = arith.constant 0 : index
    %c4_61 = arith.constant 4 : index
    %c0_62 = arith.constant 0 : index
    %61 = vector.load %arg2[%c0_58, %c0_59, %c0_60, %c4_61, %c0_62] : memref<1x1x4x10x18xf32, #tpu.memory_space<vmem>>, vector<1x1x4x1x18xf32>
    %62 = vector.shape_cast %61 : vector<1x1x4x1x18xf32> to vector<4x18xf32>
    %63 = vector.extract_strided_slice %62 {offsets = [0, 0], sizes = [4, 16], strides = [1, 1]} : vector<4x18xf32> to vector<4x16xf32>
    %64 = vector.extract_strided_slice %62 {offsets = [0, 1], sizes = [4, 16], strides = [1, 1]} : vector<4x18xf32> to vector<4x16xf32>
    %65 = vector.extract_strided_slice %62 {offsets = [0, 2], sizes = [4, 16], strides = [1, 1]} : vector<4x18xf32> to vector<4x16xf32>
    %66 = tpu.concatenate %53, %54, %55, %58, %59, %60, %63, %64, %65, %6 in 0 : vector<4x16xf32>, vector<4x16xf32>, vector<4x16xf32>, vector<4x16xf32>, vector<4x16xf32>, vector<4x16xf32>, vector<4x16xf32>, vector<4x16xf32>, vector<4x16xf32>, vector<1x16xf32> -> vector<37x16xf32>
    %cst_63 = arith.constant dense<0.000000e+00> : vector<8x16xf32>
    %67 = tpu.matmul %5, %66, %cst_63 {dimension_numbers = #tpu.dot_dimension_numbers<[1], [0], [0], [1], [0, 0, 1, 1], [], []>} : vector<8x37xf32>, vector<37x16xf32>, vector<8x16xf32> -> vector<8x16xf32>
    %cst_64 = arith.constant 0.000000e+00 : f32
    %68 = vector.broadcast %cst_64 : f32 to vector<8x16xf32>
    %69 = arith.maximumf %67, %68 : vector<8x16xf32>
    %c0_65 = arith.constant 0 : index
    %c4_66 = arith.constant 4 : index
    %c2_67 = arith.constant 2 : index
    %c0_68 = arith.constant 0 : index
    %70 = vector.load %arg4[%c0_65, %c4_66, %c2_67, %c0_68] : memref<1x12x8x16xf32, #tpu.memory_space<vmem>>, vector<1x8x1x16xf32>
    %71 = vector.shape_cast %70 : vector<1x8x1x16xf32> to vector<8x16xf32>
    %72 = vector.shape_cast %69 : vector<8x16xf32> to vector<1x8x1x16xf32>
    tpu.vector_store %arg4[%c0_65, %c4_66, %c2_67, %c0_68], %72 {strides = array<i32>} : memref<1x12x8x16xf32, #tpu.memory_space<vmem>>, vector<1x8x1x16xf32>,
    %c0_69 = arith.constant 0 : index
    %c0_70 = arith.constant 0 : index
    %c0_71 = arith.constant 0 : index
    %c3_72 = arith.constant 3 : index
    %c0_73 = arith.constant 0 : index
    %73 = vector.load %arg2[%c0_69, %c0_70, %c0_71, %c3_72, %c0_73] : memref<1x1x4x10x18xf32, #tpu.memory_space<vmem>>, vector<1x1x4x1x18xf32>
    %74 = vector.shape_cast %73 : vector<1x1x4x1x18xf32> to vector<4x18xf32>
    %75 = vector.extract_strided_slice %74 {offsets = [0, 0], sizes = [4, 16], strides = [1, 1]} : vector<4x18xf32> to vector<4x16xf32>
    %76 = vector.extract_strided_slice %74 {offsets = [0, 1], sizes = [4, 16], strides = [1, 1]} : vector<4x18xf32> to vector<4x16xf32>
    %77 = vector.extract_strided_slice %74 {offsets = [0, 2], sizes = [4, 16], strides = [1, 1]} : vector<4x18xf32> to vector<4x16xf32>
    %c0_74 = arith.constant 0 : index
    %c0_75 = arith.constant 0 : index
    %c0_76 = arith.constant 0 : index
    %c4_77 = arith.constant 4 : index
    %c0_78 = arith.constant 0 : index
    %78 = vector.load %arg2[%c0_74, %c0_75, %c0_76, %c4_77, %c0_78] : memref<1x1x4x10x18xf32, #tpu.memory_space<vmem>>, vector<1x1x4x1x18xf32>
    %79 = vector.shape_cast %78 : vector<1x1x4x1x18xf32> to vector<4x18xf32>
    %80 = vector.extract_strided_slice %79 {offsets = [0, 0], sizes = [4, 16], strides = [1, 1]} : vector<4x18xf32> to vector<4x16xf32>
    %81 = vector.extract_strided_slice %79 {offsets = [0, 1], sizes = [4, 16], strides = [1, 1]} : vector<4x18xf32> to vector<4x16xf32>
    %82 = vector.extract_strided_slice %79 {offsets = [0, 2], sizes = [4, 16], strides = [1, 1]} : vector<4x18xf32> to vector<4x16xf32>
    %c0_79 = arith.constant 0 : index
    %c0_80 = arith.constant 0 : index
    %c0_81 = arith.constant 0 : index
    %c5 = arith.constant 5 : index
    %c0_82 = arith.constant 0 : index
    %83 = vector.load %arg2[%c0_79, %c0_80, %c0_81, %c5, %c0_82] : memref<1x1x4x10x18xf32, #tpu.memory_space<vmem>>, vector<1x1x4x1x18xf32>
    %84 = vector.shape_cast %83 : vector<1x1x4x1x18xf32> to vector<4x18xf32>
    %85 = vector.extract_strided_slice %84 {offsets = [0, 0], sizes = [4, 16], strides = [1, 1]} : vector<4x18xf32> to vector<4x16xf32>
    %86 = vector.extract_strided_slice %84 {offsets = [0, 1], sizes = [4, 16], strides = [1, 1]} : vector<4x18xf32> to vector<4x16xf32>
    %87 = vector.extract_strided_slice %84 {offsets = [0, 2], sizes = [4, 16], strides = [1, 1]} : vector<4x18xf32> to vector<4x16xf32>
    %88 = tpu.concatenate %75, %76, %77, %80, %81, %82, %85, %86, %87, %6 in 0 : vector<4x16xf32>, vector<4x16xf32>, vector<4x16xf32>, vector<4x16xf32>, vector<4x16xf32>, vector<4x16xf32>, vector<4x16xf32>, vector<4x16xf32>, vector<4x16xf32>, vector<1x16xf32> -> vector<37x16xf32>
    %cst_83 = arith.constant dense<0.000000e+00> : vector<8x16xf32>
    %89 = tpu.matmul %5, %88, %cst_83 {dimension_numbers = #tpu.dot_dimension_numbers<[1], [0], [0], [1], [0, 0, 1, 1], [], []>} : vector<8x37xf32>, vector<37x16xf32>, vector<8x16xf32> -> vector<8x16xf32>
    %cst_84 = arith.constant 0.000000e+00 : f32
    %90 = vector.broadcast %cst_84 : f32 to vector<8x16xf32>
    %91 = arith.maximumf %89, %90 : vector<8x16xf32>
    %c0_85 = arith.constant 0 : index
    %c4_86 = arith.constant 4 : index
    %c3_87 = arith.constant 3 : index
    %c0_88 = arith.constant 0 : index
    %92 = vector.load %arg4[%c0_85, %c4_86, %c3_87, %c0_88] : memref<1x12x8x16xf32, #tpu.memory_space<vmem>>, vector<1x8x1x16xf32>
    %93 = vector.shape_cast %92 : vector<1x8x1x16xf32> to vector<8x16xf32>
    %94 = vector.shape_cast %91 : vector<8x16xf32> to vector<1x8x1x16xf32>
    tpu.vector_store %arg4[%c0_85, %c4_86, %c3_87, %c0_88], %94 {strides = array<i32>} : memref<1x12x8x16xf32, #tpu.memory_space<vmem>>, vector<1x8x1x16xf32>,
    %c0_89 = arith.constant 0 : index
    %c0_90 = arith.constant 0 : index
    %c0_91 = arith.constant 0 : index
    %c4_92 = arith.constant 4 : index
    %c0_93 = arith.constant 0 : index
    %95 = vector.load %arg2[%c0_89, %c0_90, %c0_91, %c4_92, %c0_93] : memref<1x1x4x10x18xf32, #tpu.memory_space<vmem>>, vector<1x1x4x1x18xf32>
    %96 = vector.shape_cast %95 : vector<1x1x4x1x18xf32> to vector<4x18xf32>
    %97 = vector.extract_strided_slice %96 {offsets = [0, 0], sizes = [4, 16], strides = [1, 1]} : vector<4x18xf32> to vector<4x16xf32>
    %98 = vector.extract_strided_slice %96 {offsets = [0, 1], sizes = [4, 16], strides = [1, 1]} : vector<4x18xf32> to vector<4x16xf32>
    %99 = vector.extract_strided_slice %96 {offsets = [0, 2], sizes = [4, 16], strides = [1, 1]} : vector<4x18xf32> to vector<4x16xf32>
    %c0_94 = arith.constant 0 : index
    %c0_95 = arith.constant 0 : index
    %c0_96 = arith.constant 0 : index
    %c5_97 = arith.constant 5 : index
    %c0_98 = arith.constant 0 : index
    %100 = vector.load %arg2[%c0_94, %c0_95, %c0_96, %c5_97, %c0_98] : memref<1x1x4x10x18xf32, #tpu.memory_space<vmem>>, vector<1x1x4x1x18xf32>
    %101 = vector.shape_cast %100 : vector<1x1x4x1x18xf32> to vector<4x18xf32>
    %102 = vector.extract_strided_slice %101 {offsets = [0, 0], sizes = [4, 16], strides = [1, 1]} : vector<4x18xf32> to vector<4x16xf32>
    %103 = vector.extract_strided_slice %101 {offsets = [0, 1], sizes = [4, 16], strides = [1, 1]} : vector<4x18xf32> to vector<4x16xf32>
    %104 = vector.extract_strided_slice %101 {offsets = [0, 2], sizes = [4, 16], strides = [1, 1]} : vector<4x18xf32> to vector<4x16xf32>
    %c0_99 = arith.constant 0 : index
    %c0_100 = arith.constant 0 : index
    %c0_101 = arith.constant 0 : index
    %c6 = arith.constant 6 : index
    %c0_102 = arith.constant 0 : index
    %105 = vector.load %arg2[%c0_99, %c0_100, %c0_101, %c6, %c0_102] : memref<1x1x4x10x18xf32, #tpu.memory_space<vmem>>, vector<1x1x4x1x18xf32>
    %106 = vector.shape_cast %105 : vector<1x1x4x1x18xf32> to vector<4x18xf32>
    %107 = vector.extract_strided_slice %106 {offsets = [0, 0], sizes = [4, 16], strides = [1, 1]} : vector<4x18xf32> to vector<4x16xf32>
    %108 = vector.extract_strided_slice %106 {offsets = [0, 1], sizes = [4, 16], strides = [1, 1]} : vector<4x18xf32> to vector<4x16xf32>
    %109 = vector.extract_strided_slice %106 {offsets = [0, 2], sizes = [4, 16], strides = [1, 1]} : vector<4x18xf32> to vector<4x16xf32>
    %110 = tpu.concatenate %97, %98, %99, %102, %103, %104, %107, %108, %109, %6 in 0 : vector<4x16xf32>, vector<4x16xf32>, vector<4x16xf32>, vector<4x16xf32>, vector<4x16xf32>, vector<4x16xf32>, vector<4x16xf32>, vector<4x16xf32>, vector<4x16xf32>, vector<1x16xf32> -> vector<37x16xf32>
    %cst_103 = arith.constant dense<0.000000e+00> : vector<8x16xf32>
    %111 = tpu.matmul %5, %110, %cst_103 {dimension_numbers = #tpu.dot_dimension_numbers<[1], [0], [0], [1], [0, 0, 1, 1], [], []>} : vector<8x37xf32>, vector<37x16xf32>, vector<8x16xf32> -> vector<8x16xf32>
    %cst_104 = arith.constant 0.000000e+00 : f32
    %112 = vector.broadcast %cst_104 : f32 to vector<8x16xf32>
    %113 = arith.maximumf %111, %112 : vector<8x16xf32>
    %c0_105 = arith.constant 0 : index
    %c4_106 = arith.constant 4 : index
    %c4_107 = arith.constant 4 : index
    %c0_108 = arith.constant 0 : index
    %114 = vector.load %arg4[%c0_105, %c4_106, %c4_107, %c0_108] : memref<1x12x8x16xf32, #tpu.memory_space<vmem>>, vector<1x8x1x16xf32>
    %115 = vector.shape_cast %114 : vector<1x8x1x16xf32> to vector<8x16xf32>
    %116 = vector.shape_cast %113 : vector<8x16xf32> to vector<1x8x1x16xf32>
    tpu.vector_store %arg4[%c0_105, %c4_106, %c4_107, %c0_108], %116 {strides = array<i32>} : memref<1x12x8x16xf32, #tpu.memory_space<vmem>>, vector<1x8x1x16xf32>,
    %c0_109 = arith.constant 0 : index
    %c0_110 = arith.constant 0 : index
    %c0_111 = arith.constant 0 : index
    %c5_112 = arith.constant 5 : index
    %c0_113 = arith.constant 0 : index
    %117 = vector.load %arg2[%c0_109, %c0_110, %c0_111, %c5_112, %c0_113] : memref<1x1x4x10x18xf32, #tpu.memory_space<vmem>>, vector<1x1x4x1x18xf32>
    %118 = vector.shape_cast %117 : vector<1x1x4x1x18xf32> to vector<4x18xf32>
    %119 = vector.extract_strided_slice %118 {offsets = [0, 0], sizes = [4, 16], strides = [1, 1]} : vector<4x18xf32> to vector<4x16xf32>
    %120 = vector.extract_strided_slice %118 {offsets = [0, 1], sizes = [4, 16], strides = [1, 1]} : vector<4x18xf32> to vector<4x16xf32>
    %121 = vector.extract_strided_slice %118 {offsets = [0, 2], sizes = [4, 16], strides = [1, 1]} : vector<4x18xf32> to vector<4x16xf32>
    %c0_114 = arith.constant 0 : index
    %c0_115 = arith.constant 0 : index
    %c0_116 = arith.constant 0 : index
    %c6_117 = arith.constant 6 : index
    %c0_118 = arith.constant 0 : index
    %122 = vector.load %arg2[%c0_114, %c0_115, %c0_116, %c6_117, %c0_118] : memref<1x1x4x10x18xf32, #tpu.memory_space<vmem>>, vector<1x1x4x1x18xf32>
    %123 = vector.shape_cast %122 : vector<1x1x4x1x18xf32> to vector<4x18xf32>
    %124 = vector.extract_strided_slice %123 {offsets = [0, 0], sizes = [4, 16], strides = [1, 1]} : vector<4x18xf32> to vector<4x16xf32>
    %125 = vector.extract_strided_slice %123 {offsets = [0, 1], sizes = [4, 16], strides = [1, 1]} : vector<4x18xf32> to vector<4x16xf32>
    %126 = vector.extract_strided_slice %123 {offsets = [0, 2], sizes = [4, 16], strides = [1, 1]} : vector<4x18xf32> to vector<4x16xf32>
    %c0_119 = arith.constant 0 : index
    %c0_120 = arith.constant 0 : index
    %c0_121 = arith.constant 0 : index
    %c7 = arith.constant 7 : index
    %c0_122 = arith.constant 0 : index
    %127 = vector.load %arg2[%c0_119, %c0_120, %c0_121, %c7, %c0_122] : memref<1x1x4x10x18xf32, #tpu.memory_space<vmem>>, vector<1x1x4x1x18xf32>
    %128 = vector.shape_cast %127 : vector<1x1x4x1x18xf32> to vector<4x18xf32>
    %129 = vector.extract_strided_slice %128 {offsets = [0, 0], sizes = [4, 16], strides = [1, 1]} : vector<4x18xf32> to vector<4x16xf32>
    %130 = vector.extract_strided_slice %128 {offsets = [0, 1], sizes = [4, 16], strides = [1, 1]} : vector<4x18xf32> to vector<4x16xf32>
    %131 = vector.extract_strided_slice %128 {offsets = [0, 2], sizes = [4, 16], strides = [1, 1]} : vector<4x18xf32> to vector<4x16xf32>
    %132 = tpu.concatenate %119, %120, %121, %124, %125, %126, %129, %130, %131, %6 in 0 : vector<4x16xf32>, vector<4x16xf32>, vector<4x16xf32>, vector<4x16xf32>, vector<4x16xf32>, vector<4x16xf32>, vector<4x16xf32>, vector<4x16xf32>, vector<4x16xf32>, vector<1x16xf32> -> vector<37x16xf32>
    %cst_123 = arith.constant dense<0.000000e+00> : vector<8x16xf32>
    %133 = tpu.matmul %5, %132, %cst_123 {dimension_numbers = #tpu.dot_dimension_numbers<[1], [0], [0], [1], [0, 0, 1, 1], [], []>} : vector<8x37xf32>, vector<37x16xf32>, vector<8x16xf32> -> vector<8x16xf32>
    %cst_124 = arith.constant 0.000000e+00 : f32
    %134 = vector.broadcast %cst_124 : f32 to vector<8x16xf32>
    %135 = arith.maximumf %133, %134 : vector<8x16xf32>
    %c0_125 = arith.constant 0 : index
    %c4_126 = arith.constant 4 : index
    %c5_127 = arith.constant 5 : index
    %c0_128 = arith.constant 0 : index
    %136 = vector.load %arg4[%c0_125, %c4_126, %c5_127, %c0_128] : memref<1x12x8x16xf32, #tpu.memory_space<vmem>>, vector<1x8x1x16xf32>
    %137 = vector.shape_cast %136 : vector<1x8x1x16xf32> to vector<8x16xf32>
    %138 = vector.shape_cast %135 : vector<8x16xf32> to vector<1x8x1x16xf32>
    tpu.vector_store %arg4[%c0_125, %c4_126, %c5_127, %c0_128], %138 {strides = array<i32>} : memref<1x12x8x16xf32, #tpu.memory_space<vmem>>, vector<1x8x1x16xf32>,
    %c0_129 = arith.constant 0 : index
    %c0_130 = arith.constant 0 : index
    %c0_131 = arith.constant 0 : index
    %c6_132 = arith.constant 6 : index
    %c0_133 = arith.constant 0 : index
    %139 = vector.load %arg2[%c0_129, %c0_130, %c0_131, %c6_132, %c0_133] : memref<1x1x4x10x18xf32, #tpu.memory_space<vmem>>, vector<1x1x4x1x18xf32>
    %140 = vector.shape_cast %139 : vector<1x1x4x1x18xf32> to vector<4x18xf32>
    %141 = vector.extract_strided_slice %140 {offsets = [0, 0], sizes = [4, 16], strides = [1, 1]} : vector<4x18xf32> to vector<4x16xf32>
    %142 = vector.extract_strided_slice %140 {offsets = [0, 1], sizes = [4, 16], strides = [1, 1]} : vector<4x18xf32> to vector<4x16xf32>
    %143 = vector.extract_strided_slice %140 {offsets = [0, 2], sizes = [4, 16], strides = [1, 1]} : vector<4x18xf32> to vector<4x16xf32>
    %c0_134 = arith.constant 0 : index
    %c0_135 = arith.constant 0 : index
    %c0_136 = arith.constant 0 : index
    %c7_137 = arith.constant 7 : index
    %c0_138 = arith.constant 0 : index
    %144 = vector.load %arg2[%c0_134, %c0_135, %c0_136, %c7_137, %c0_138] : memref<1x1x4x10x18xf32, #tpu.memory_space<vmem>>, vector<1x1x4x1x18xf32>
    %145 = vector.shape_cast %144 : vector<1x1x4x1x18xf32> to vector<4x18xf32>
    %146 = vector.extract_strided_slice %145 {offsets = [0, 0], sizes = [4, 16], strides = [1, 1]} : vector<4x18xf32> to vector<4x16xf32>
    %147 = vector.extract_strided_slice %145 {offsets = [0, 1], sizes = [4, 16], strides = [1, 1]} : vector<4x18xf32> to vector<4x16xf32>
    %148 = vector.extract_strided_slice %145 {offsets = [0, 2], sizes = [4, 16], strides = [1, 1]} : vector<4x18xf32> to vector<4x16xf32>
    %c0_139 = arith.constant 0 : index
    %c0_140 = arith.constant 0 : index
    %c0_141 = arith.constant 0 : index
    %c8 = arith.constant 8 : index
    %c0_142 = arith.constant 0 : index
    %149 = vector.load %arg2[%c0_139, %c0_140, %c0_141, %c8, %c0_142] : memref<1x1x4x10x18xf32, #tpu.memory_space<vmem>>, vector<1x1x4x1x18xf32>
    %150 = vector.shape_cast %149 : vector<1x1x4x1x18xf32> to vector<4x18xf32>
    %151 = vector.extract_strided_slice %150 {offsets = [0, 0], sizes = [4, 16], strides = [1, 1]} : vector<4x18xf32> to vector<4x16xf32>
    %152 = vector.extract_strided_slice %150 {offsets = [0, 1], sizes = [4, 16], strides = [1, 1]} : vector<4x18xf32> to vector<4x16xf32>
    %153 = vector.extract_strided_slice %150 {offsets = [0, 2], sizes = [4, 16], strides = [1, 1]} : vector<4x18xf32> to vector<4x16xf32>
    %154 = tpu.concatenate %141, %142, %143, %146, %147, %148, %151, %152, %153, %6 in 0 : vector<4x16xf32>, vector<4x16xf32>, vector<4x16xf32>, vector<4x16xf32>, vector<4x16xf32>, vector<4x16xf32>, vector<4x16xf32>, vector<4x16xf32>, vector<4x16xf32>, vector<1x16xf32> -> vector<37x16xf32>
    %cst_143 = arith.constant dense<0.000000e+00> : vector<8x16xf32>
    %155 = tpu.matmul %5, %154, %cst_143 {dimension_numbers = #tpu.dot_dimension_numbers<[1], [0], [0], [1], [0, 0, 1, 1], [], []>} : vector<8x37xf32>, vector<37x16xf32>, vector<8x16xf32> -> vector<8x16xf32>
    %cst_144 = arith.constant 0.000000e+00 : f32
    %156 = vector.broadcast %cst_144 : f32 to vector<8x16xf32>
    %157 = arith.maximumf %155, %156 : vector<8x16xf32>
    %c0_145 = arith.constant 0 : index
    %c4_146 = arith.constant 4 : index
    %c6_147 = arith.constant 6 : index
    %c0_148 = arith.constant 0 : index
    %158 = vector.load %arg4[%c0_145, %c4_146, %c6_147, %c0_148] : memref<1x12x8x16xf32, #tpu.memory_space<vmem>>, vector<1x8x1x16xf32>
    %159 = vector.shape_cast %158 : vector<1x8x1x16xf32> to vector<8x16xf32>
    %160 = vector.shape_cast %157 : vector<8x16xf32> to vector<1x8x1x16xf32>
    tpu.vector_store %arg4[%c0_145, %c4_146, %c6_147, %c0_148], %160 {strides = array<i32>} : memref<1x12x8x16xf32, #tpu.memory_space<vmem>>, vector<1x8x1x16xf32>,
    %c0_149 = arith.constant 0 : index
    %c0_150 = arith.constant 0 : index
    %c0_151 = arith.constant 0 : index
    %c7_152 = arith.constant 7 : index
    %c0_153 = arith.constant 0 : index
    %161 = vector.load %arg2[%c0_149, %c0_150, %c0_151, %c7_152, %c0_153] : memref<1x1x4x10x18xf32, #tpu.memory_space<vmem>>, vector<1x1x4x1x18xf32>
    %162 = vector.shape_cast %161 : vector<1x1x4x1x18xf32> to vector<4x18xf32>
    %163 = vector.extract_strided_slice %162 {offsets = [0, 0], sizes = [4, 16], strides = [1, 1]} : vector<4x18xf32> to vector<4x16xf32>
    %164 = vector.extract_strided_slice %162 {offsets = [0, 1], sizes = [4, 16], strides = [1, 1]} : vector<4x18xf32> to vector<4x16xf32>
    %165 = vector.extract_strided_slice %162 {offsets = [0, 2], sizes = [4, 16], strides = [1, 1]} : vector<4x18xf32> to vector<4x16xf32>
    %c0_154 = arith.constant 0 : index
    %c0_155 = arith.constant 0 : index
    %c0_156 = arith.constant 0 : index
    %c8_157 = arith.constant 8 : index
    %c0_158 = arith.constant 0 : index
    %166 = vector.load %arg2[%c0_154, %c0_155, %c0_156, %c8_157, %c0_158] : memref<1x1x4x10x18xf32, #tpu.memory_space<vmem>>, vector<1x1x4x1x18xf32>
    %167 = vector.shape_cast %166 : vector<1x1x4x1x18xf32> to vector<4x18xf32>
    %168 = vector.extract_strided_slice %167 {offsets = [0, 0], sizes = [4, 16], strides = [1, 1]} : vector<4x18xf32> to vector<4x16xf32>
    %169 = vector.extract_strided_slice %167 {offsets = [0, 1], sizes = [4, 16], strides = [1, 1]} : vector<4x18xf32> to vector<4x16xf32>
    %170 = vector.extract_strided_slice %167 {offsets = [0, 2], sizes = [4, 16], strides = [1, 1]} : vector<4x18xf32> to vector<4x16xf32>
    %c0_159 = arith.constant 0 : index
    %c0_160 = arith.constant 0 : index
    %c0_161 = arith.constant 0 : index
    %c9 = arith.constant 9 : index
    %c0_162 = arith.constant 0 : index
    %171 = vector.load %arg2[%c0_159, %c0_160, %c0_161, %c9, %c0_162] : memref<1x1x4x10x18xf32, #tpu.memory_space<vmem>>, vector<1x1x4x1x18xf32>
    %172 = vector.shape_cast %171 : vector<1x1x4x1x18xf32> to vector<4x18xf32>
    %173 = vector.extract_strided_slice %172 {offsets = [0, 0], sizes = [4, 16], strides = [1, 1]} : vector<4x18xf32> to vector<4x16xf32>
    %174 = vector.extract_strided_slice %172 {offsets = [0, 1], sizes = [4, 16], strides = [1, 1]} : vector<4x18xf32> to vector<4x16xf32>
    %175 = vector.extract_strided_slice %172 {offsets = [0, 2], sizes = [4, 16], strides = [1, 1]} : vector<4x18xf32> to vector<4x16xf32>
    %176 = tpu.concatenate %163, %164, %165, %168, %169, %170, %173, %174, %175, %6 in 0 : vector<4x16xf32>, vector<4x16xf32>, vector<4x16xf32>, vector<4x16xf32>, vector<4x16xf32>, vector<4x16xf32>, vector<4x16xf32>, vector<4x16xf32>, vector<4x16xf32>, vector<1x16xf32> -> vector<37x16xf32>
    %cst_163 = arith.constant dense<0.000000e+00> : vector<8x16xf32>
    %177 = tpu.matmul %5, %176, %cst_163 {dimension_numbers = #tpu.dot_dimension_numbers<[1], [0], [0], [1], [0, 0, 1, 1], [], []>} : vector<8x37xf32>, vector<37x16xf32>, vector<8x16xf32> -> vector<8x16xf32>
    %cst_164 = arith.constant 0.000000e+00 : f32
    %178 = vector.broadcast %cst_164 : f32 to vector<8x16xf32>
    %179 = arith.maximumf %177, %178 : vector<8x16xf32>
    %c0_165 = arith.constant 0 : index
    %c4_166 = arith.constant 4 : index
    %c7_167 = arith.constant 7 : index
    %c0_168 = arith.constant 0 : index
    %180 = vector.load %arg4[%c0_165, %c4_166, %c7_167, %c0_168] : memref<1x12x8x16xf32, #tpu.memory_space<vmem>>, vector<1x8x1x16xf32>
    %181 = vector.shape_cast %180 : vector<1x8x1x16xf32> to vector<8x16xf32>
    %182 = vector.shape_cast %179 : vector<8x16xf32> to vector<1x8x1x16xf32>
    tpu.vector_store %arg4[%c0_165, %c4_166, %c7_167, %c0_168], %182 {strides = array<i32>} : memref<1x12x8x16xf32, #tpu.memory_space<vmem>>, vector<1x8x1x16xf32>,
    return
  }
  func.func @transform_0(%arg0: i32, %arg1: i32) -> (i32, i32, i32, i32, i32) {
    %c0_i32 = arith.constant 0 : i32
    %c0_i32_0 = arith.constant 0 : i32
    %c0_i32_1 = arith.constant 0 : i32
    %c0_i32_2 = arith.constant 0 : i32
    return %arg0, %arg1, %c0_i32, %c0_i32_0, %c0_i32_1 : i32, i32, i32, i32, i32
  }
  func.func @transform_1(%arg0: i32, %arg1: i32) -> (i32, i32) {
    %c0_i32 = arith.constant 0 : i32
    %c0_i32_0 = arith.constant 0 : i32
    %c0_i32_1 = arith.constant 0 : i32
    return %c0_i32, %c0_i32_0 : i32, i32
  }
  func.func @transform_2(%arg0: i32, %arg1: i32) -> (i32, i32, i32, i32) {
    %c0_i32 = arith.constant 0 : i32
    %c0_i32_0 = arith.constant 0 : i32
    %c0_i32_1 = arith.constant 0 : i32
    return %arg0, %c0_i32, %arg1, %c0_i32_0 : i32, i32, i32, i32
  }
}

</mosaic_0001>

<llo_original>
// kernel: setq_rdb_conv_in.1
$region0: #{setq_rdb_conv_in.1}
  #allocation0 [shape = 'u32[]', space=smem, size = 0x4, offset = 0x4, fixed_abs, tag = 'smem constant byte address 0x4 - core index']
  #allocation1 [shape = 'u32[72,128]{1,0:T(1,128)}', space=vmem, size = 0x9000, scoped, tag = 'internal scratch']
  %s0 = inlined_call_operand.vmem [shape: f32[2,2,4,10,18], index: 0, kind: input, shape index: {}]
  %s1 = inlined_call_operand.vmem [shape: f32[8,37], index: 1, kind: input, shape index: {}]
  %s2 = inlined_call_operand.hbm [shape: f32[2,12,16,16], index: 2, kind: output, shape index: {}]
  %s3 = sld [smem:[#allocation0]]
  $region41: #{setq_rdb_conv_in.1} parent=0
    _
  %s5 = ssub.s32 1, %s3
  %s6 = scalar_select 0, %s5, %s3
  $region1: #{setq_rdb_conv_in.1} parent=0
    #allocation2 [shape = 'u8[98304]{0}', space=vmem, size = 0x18000, scoped, tag = 'output window, operand 0']
    #allocation3 [shape = 's32[2]{0}', space=sflag, size = 0x8, scoped, tag = 'scoped memory for setq_rdb_conv_in.1']
    %7 = vsyncpa [#allocation3], 0
    %s8 = scalar_lea.sflag [#allocation3], 1
    %9 = vsyncpa %s8, 0
    loop: start=0, step=1, limit=6
    $region2: #{setq_rdb_conv_in.1} parent=1 // loop_pre_header
      _
    $region3: #{setq_rdb_conv_in.1} parent=1 // loop_header
      %s11 = sphi 0, %s15
      %p12 = scmp.ge.s32.totalorder %s11, 6
      %s18 = sphi 0, %s30
      %s19 = sphi 0, %s26
      %s20 = sphi 0, %s18
      %s21 = sphi 0, %s19
      %s22 = sphi 0, %s20
      %s23 = sphi 0, %s21
      %s35 = sphi 0, %s37
      %s38 = sphi 0, %s35
      %s39 = sphi 0, %s38
      %s55 = sphi 0, %s39
      %s59 = sphi 0, %s59
      %s61 = sphi 0, %s59
      %s62 = sphi 0, %s61
      %s76 = sphi 0, %s62
      %s84 = sphi 0, %s86
      %s87 = sphi 0, %s84
      %s88 = sphi 0, %s87
      %s104 = sphi 0, %s88
    $region4: #{setq_rdb_conv_in.1} parent=1 // loop_header_branch
      %14 = sbr.rel (%p12) target = $region8
    $region5: #{setq_rdb_conv_in.1} parent=1 // loop_body
      %s16 = ssub.s32 %s11, 1
      %s17 = ssub.s32 %s11, 2
      %s24 = sadd.s32 1, %s19
      %p25 = scmp.ge.s32.totalorder %s24, 2
      %s26 = scalar_select %p25, 0, %s24
      %s27 = sadd.s32 1, %s18
      %s28 = scalar_select %p25, %s27, %s18
      %p29 = scmp.ge.s32.totalorder %s28, 2
      %s30 = scalar_select %p29, 0, %s28
      %s31 = ssub.s32 %s18, %s30
      %s32 = ssub.s32 %s19, %s26
      %s33 = sor.u32 %s31, %s32
      %p34 = scmp.eq.s32.totalorder %s33, 0
      %s36 = sadd.s32 %s35, 1
      %s37 = scalar_select %p34, %s35, %s36
      %p40 = pneg %p34
      %p41 = scmp.eq.s32.totalorder %s11, 3
      %p42 = por %p40, %p41
      %p43 = scmp.ne.s32.totalorder %s35, %s38
      %p44 = scmp.eq.s32.totalorder %s11, 0
      %p45 = por %p43, %p44
      %p46 = scmp.ne.s32.totalorder %s35, %s38
      %p47 = scmp.eq.s32.totalorder %s16, 3
      %p48 = por %p46, %p47
      %p49 = scmp.ne.s32.totalorder %s38, %s39
      %p50 = scmp.eq.s32.totalorder %s16, 0
      %p51 = por %p49, %p50
      %p52 = scmp.ne.s32.totalorder %s38, %s39
      %p53 = scmp.eq.s32.totalorder %s17, 3
      %p54 = por %p52, %p53
      %p56 = scmp.ne.s32.totalorder %s39, %s55
      %p57 = scmp.eq.s32.totalorder %s17, 0
      %p58 = por %p56, %p57
      %s60 = sadd.s32 %s59, 1
      %p63 = scmp.eq.s32.totalorder %s11, 3
      %p64 = scmp.ne.s32.totalorder %s59, %s61
      %p65 = scmp.eq.s32.totalorder %s11, 0
      %p66 = por %p64, %p65
      %p67 = scmp.ne.s32.totalorder %s59, %s61
      %p68 = scmp.eq.s32.totalorder %s16, 3
      %p69 = por %p67, %p68
      %p70 = scmp.ne.s32.totalorder %s61, %s62
      %p71 = scmp.eq.s32.totalorder %s16, 0
      %p72 = por %p70, %p71
      %p73 = scmp.ne.s32.totalorder %s61, %s62
      %p74 = scmp.eq.s32.totalorder %s17, 3
      %p75 = por %p73, %p74
      %p77 = scmp.ne.s32.totalorder %s62, %s76
      %p78 = scmp.eq.s32.totalorder %s17, 0
      %p79 = por %p77, %p78
      %s80 = ssub.s32 %s18, %s30
      %s81 = ssub.s32 %s19, %s26
      %s82 = sor.u32 %s80, %s81
      %p83 = scmp.eq.s32.totalorder %s82, 0
      %s85 = sadd.s32 %s84, 1
      %s86 = scalar_select %p83, %s84, %s85
      %p89 = pneg %p83
      %p90 = scmp.eq.s32.totalorder %s11, 3
      %p91 = por %p89, %p90
      %p92 = scmp.ne.s32.totalorder %s84, %s87
      %p93 = scmp.eq.s32.totalorder %s11, 0
      %p94 = por %p92, %p93
      %p95 = scmp.ne.s32.totalorder %s84, %s87
      %p96 = scmp.eq.s32.totalorder %s16, 3
      %p97 = por %p95, %p96
      %p98 = scmp.ne.s32.totalorder %s87, %s88
      %p99 = scmp.eq.s32.totalorder %s16, 0
      %p100 = por %p98, %p99
      %p101 = scmp.ne.s32.totalorder %s87, %s88
      %p102 = scmp.eq.s32.totalorder %s17, 3
      %p103 = por %p101, %p102
      %p105 = scmp.ne.s32.totalorder %s88, %s104
      %p106 = scmp.eq.s32.totalorder %s17, 0
      %p107 = por %p105, %p106
      %p108 = scmp.le.s32.totalorder 1, %s11
      %p109 = scmp.lt.s32.totalorder %s11, 5
      %p110 = pnand %p108, %p109
      %p111 = pneg %p110
      // Predicated region
      $region9: #{setq_rdb_conv_in.1} parent=5 // pred_check
        _
      $region10: #{setq_rdb_conv_in.1} parent=5 // pred_check_branch
        %113 = sbr.rel (%p110) target = $region12
      $region11: #{setq_rdb_conv_in.1} parent=5 // pred_region
        %s114 = ssub.s32 %s11, 1
        // Predicated region
        $region13: #{setq_rdb_conv_in.1} parent=11 // pred_check
          %p115 = pneg %p72
        $region14: #{setq_rdb_conv_in.1} parent=11 // pred_check_branch
          %117 = sbr.rel (%p115) target = $region16
        $region15: #{setq_rdb_conv_in.1} parent=11 // pred_region
          _
        $region16: #{setq_rdb_conv_in.1} parent=11 // pred_fallthru
          _
      $region12: #{setq_rdb_conv_in.1} parent=5 // pred_fallthru
        _
      %p118 = scmp.lt.s32.totalorder %s11, 4
      // Predicated region
      $region17: #{setq_rdb_conv_in.1} parent=5 // pred_check
        %p119 = pneg %p118
      $region18: #{setq_rdb_conv_in.1} parent=5 // pred_check_branch
        %121 = sbr.rel (%p119) target = $region20
      $region19: #{setq_rdb_conv_in.1} parent=5 // pred_region
        // Predicated region
        $region21: #{setq_rdb_conv_in.1} parent=19 // pred_check
          %p122 = pneg %p45
        $region22: #{setq_rdb_conv_in.1} parent=19 // pred_check_branch
          %124 = sbr.rel (%p122) target = $region24
        $region23: #{setq_rdb_conv_in.1} parent=19 // pred_region
          %p125 = scmp.lt.s32.totalorder %s18, 1
          %s126 = scalar_select %p125, %s18, 1
          %p127 = scmp.lt.s32.totalorder %s19, 1
          %s128 = scalar_select %p127, %s19, 1
          %s129 = smul.addr %s128, 8
          %s130 = smul.addr %s126, 16
          %s131 = sadd.s32 %s129, %s130
          %s132 = smul.addr %s131, 8
          %s133 = scalar_lea.vmem %s0, %s132
        $region24: #{setq_rdb_conv_in.1} parent=19 // pred_fallthru
          _
      $region20: #{setq_rdb_conv_in.1} parent=5 // pred_fallthru
        _
      %p134 = scmp.le.s32.totalorder 1, %s11
      %p135 = scmp.lt.s32.totalorder %s11, 5
      %p136 = pnand %p134, %p135
      %p137 = pneg %p136
      // Predicated region
      $region25: #{setq_rdb_conv_in.1} parent=5 // pred_check
        _
      $region26: #{setq_rdb_conv_in.1} parent=5 // pred_check_branch
        %139 = sbr.rel (%p136) target = $region28
      $region27: #{setq_rdb_conv_in.1} parent=5 // pred_region
        %s140 = ssub.s32 %s11, 1
        %p141 = scmp.lt.s32.totalorder %s20, 1
        %s142 = scalar_select %p141, %s20, 1
        %p143 = scmp.lt.s32.totalorder %s21, 1
        %s144 = scalar_select %p143, %s21, 1
        %s145 = smul.addr %s144, 8
        %s146 = smul.addr %s142, 16
        %s147 = sadd.s32 %s145, %s146
        %s148 = smul.addr %s147, 8
        %s149 = scalar_lea.vmem %s0, %s148
        %p150 = pneg %p51
        %p151 = pneg %p48
        %p152 = pneg %p72
        %p153 = pneg %p69
        %p154 = pneg %p100
        %p155 = pneg %p97
        %s156 = sand.u32 %s87, 1
        %s157 = scalar_lea.sflag [#allocation3], %s156
        %s158 = sand.u32 %s87, 1
        %s159 = smul.addr %s158, 96
        %s160 = scalar_lea.vmem [#allocation2], %s159
        %p161 = scmp.lt.s32.totalorder %s20, 1
        %s162 = scalar_select %p161, %s20, 1
        %p163 = scmp.lt.s32.totalorder %s21, 1
        %s164 = scalar_select %p163, %s21, 1
        %s165 = smul.addr %s164, 8
        %s166 = smul.addr %s162, 16
        %s167 = sadd.s32 %s165, %s166
        %s168 = smul.addr %s167, 8
        %s169 = scalar_lea.vmem %s0, %s168
        %v170 = vld [vmem:[%s169 + $0x1] sm:$0xff]
        %v171 = vld [vmem:[%s169 + $0x11] sm:$0xff]
        %v172 = vld [vmem:[%s169 + $0x21] sm:$0xff]
        %v173 = vld [vmem:[%s169 + $0x31] sm:$0xff]
        %178 = vrot.lane.b32.xlu0 %v170, 127
        %v179 = vpop.permute.xlu0 %178
        %180 = vrot.lane.b32.xlu0 %v171, 127
        %v181 = vpop.permute.xlu0 %180
        %182 = vrot.lane.b32.xlu0 %v172, 127
        %v183 = vpop.permute.xlu0 %182
        %184 = vrot.lane.b32.xlu0 %v173, 127
        %v185 = vpop.permute.xlu0 %184
        %vm190 = vcmask 130048
        %191 = vst.msk [vmem:[%s160] sm:$0xff] %vm190, %v179
        %192 = vst.msk [vmem:[%s160 + $0x8] sm:$0xff] %vm190, %v181
        %193 = vst.msk [vmem:[%s160 + $0x10] sm:$0xff] %vm190, %v183
        %194 = vst.msk [vmem:[%s160 + $0x18] sm:$0xff] %vm190, %v185
        %v195 = vld [vmem:[%s1] sm:$0xff]
        %v196 = vld [vmem:[%s169] sm:$0x1]
        %v197 = vld [vmem:[%s169 + $0x10] sm:$0x1]
        %v198 = vld [vmem:[%s169 + $0x20] sm:$0x1]
        %v199 = vld [vmem:[%s169 + $0x30] sm:$0x1]
        %v200 = vld [vmem:[%s169 + $0x1] sm:$0x1]
        %v201 = vld [vmem:[%s169 + $0x11] sm:$0x1]
        %v202 = vld [vmem:[%s169 + $0x21] sm:$0x1]
        %v203 = vld [vmem:[%s169 + $0x31] sm:$0x1]
        %v204 = vld [vmem:[%s169 + $0x2] sm:$0x1]
        %v205 = vld [vmem:[%s169 + $0x12] sm:$0x1]
        %v206 = vld [vmem:[%s169 + $0x22] sm:$0x1]
        %v207 = vld [vmem:[%s169 + $0x32] sm:$0x1]
        %v212 = vrot.slane %v197, 7
        %vm213 = vcmask 1041409
        %v214 = vsel %vm213, %v212, %v196
        %v215 = vrot.slane %v198, 6
        %vm216 = vcmask 1042434
        %v217 = vsel %vm216, %v215, %v214
        %v218 = vrot.slane %v199, 5
        %vm219 = vcmask 1043459
        %v220 = vsel %vm219, %v218, %v217
        %v222 = vrot.slane %v196, 4
        %v223 = vrot.slane %v197, 3
        %vm224 = vcmask 1045509
        %v225 = vsel %vm224, %v223, %v222
        %v226 = vrot.slane %v198, 2
        %vm227 = vcmask 1046534
        %v228 = vsel %vm227, %v226, %v225
        %v229 = vrot.slane %v199, 1
        %vm230 = vcmask 1047559
        %v231 = vsel %vm230, %v229, %v228
        %232 = vrot.lane.b32.xlu0 %v231, 127
        %v233 = vpop.permute.xlu0 %232
        %235 = vrot.lane.b32.xlu0 %v220, 126
        %v236 = vpop.permute.xlu0 %235
        %v242 = vrot.slane %v200, 4
        %v243 = vrot.slane %v201, 3
        %v244 = vsel %vm224, %v243, %v242
        %v245 = vrot.slane %v202, 2
        %v246 = vsel %vm227, %v245, %v244
        %v247 = vrot.slane %v203, 1
        %v248 = vsel %vm230, %v247, %v246
        %v250 = vrot.slane %v201, 7
        %v251 = vsel %vm213, %v250, %v200
        %v252 = vrot.slane %v202, 6
        %v253 = vsel %vm216, %v252, %v251
        %v254 = vrot.slane %v203, 5
        %v255 = vsel %vm219, %v254, %v253
        %256 = vrot.lane.b32.xlu0 %v255, 127
        %v257 = vpop.permute.xlu0 %256
        %259 = vrot.lane.b32.xlu0 %v248, 126
        %v260 = vpop.permute.xlu0 %259
        %v266 = vrot.slane %v205, 7
        %v267 = vsel %vm213, %v266, %v204
        %v268 = vrot.slane %v206, 6
        %v269 = vsel %vm216, %v268, %v267
        %v270 = vrot.slane %v207, 5
        %v271 = vsel %vm219, %v270, %v269
        %v273 = vrot.slane %v204, 4
        %v274 = vrot.slane %v205, 3
        %v275 = vsel %vm224, %v274, %v273
        %v276 = vrot.slane %v206, 2
        %v277 = vsel %vm227, %v276, %v275
        %v278 = vrot.slane %v207, 1
        %v279 = vsel %vm230, %v278, %v277
        %280 = vrot.lane.b32.xlu0 %v279, 127
        %v281 = vpop.permute.xlu0 %280
        %283 = vrot.lane.b32.xlu0 %v271, 126
        %v284 = vpop.permute.xlu0 %283
        %vm286 = vcmask 1043456
        %v287 = vsel %vm286, %v220, %v233
        %v288 = vsel %vm286, %v236, %v248
        %v289 = vsel %vm286, %v257, %v260
        %v290 = vsel %vm286, %v271, %v281
        %v291 = vsel %vm286, %v284, 1.0
        %vm292 = vcmask 302080
        %v294 = vsel %vm292, %v195, 0
        %vm296 = vcmask 1044480
        %v298 = vsel %vm296, %v291, 0
        %300 = vmatpush.msra.mxu0 0.0
        %301 = vmatpush.msra.mxu0 0.0
        %302 = vmatpush.msra.mxu0 0.0
        %303 = vmatpush.msra.mxu0 0.0
        %304 = vmatpush.msra.mxu0 0.0
        %305 = vmatpush.msra.mxu0 0.0
        %306 = vmatpush.msra.mxu0 0.0
        %307 = vmatpush.msra.mxu0 0.0
        %308 = vmatpush.msra.mxu0 0.0
        %309 = vmatpush.msra.mxu0 0.0
        %310 = vmatpush.msra.mxu0 0.0
        %311 = vmatpush.msra.mxu0 %v298
        %312 = vmatpush.msra.mxu0 %v290
        %313 = vmatpush.msra.mxu0 %v289
        %314 = vmatpush.msra.mxu0 %v288
        %315 = vmatpush.msra.mxu0 %v287
        %316 = vmatmul.f32.gmra.mxu0 %v294
        %v317 = vpop.f32.mrf.mxu0
        %v318 = vadd.f32 0.0, %v317
        %319 = vdwg.mxu0
        %v320 = vmax.f32 %v318, 0.0
        %v322 = vrot.slane %v320, 1
        %v323 = vrot.slane %v320, 2
        %v324 = vrot.slane %v320, 3
        %v325 = vrot.slane %v320, 4
        %v326 = vrot.slane %v320, 5
        %v327 = vrot.slane %v320, 6
        %v328 = vrot.slane %v320, 7
        %s336 = scalar_lea.vmem %s160, 32 [#allocation2]
        %vm337 = vcmask 122880
        %338 = vst.msk [vmem:[%s336] sm:$0x1] %vm337, %v320
        %339 = vst.msk [vmem:[%s336 + $0x8] sm:$0x1] %vm337, %v322
        %340 = vst.msk [vmem:[%s336 + $0x10] sm:$0x1] %vm337, %v323
        %341 = vst.msk [vmem:[%s336 + $0x18] sm:$0x1] %vm337, %v324
        %342 = vst.msk [vmem:[%s336 + $0x20] sm:$0x1] %vm337, %v325
        %343 = vst.msk [vmem:[%s336 + $0x28] sm:$0x1] %vm337, %v326
        %344 = vst.msk [vmem:[%s336 + $0x30] sm:$0x1] %vm337, %v327
        %345 = vst.msk [vmem:[%s336 + $0x38] sm:$0x1] %vm337, %v328
        %v346 = vld [vmem:[%s169 + $0x1] sm:$0x1]
        %v347 = vld [vmem:[%s169 + $0x11] sm:$0x1]
        %v348 = vld [vmem:[%s169 + $0x21] sm:$0x1]
        %v349 = vld [vmem:[%s169 + $0x31] sm:$0x1]
        %v350 = vld [vmem:[%s169 + $0x2] sm:$0x1]
        %v351 = vld [vmem:[%s169 + $0x12] sm:$0x1]
        %v352 = vld [vmem:[%s169 + $0x22] sm:$0x1]
        %v353 = vld [vmem:[%s169 + $0x32] sm:$0x1]
        %v354 = vld [vmem:[%s169 + $0x3] sm:$0x1]
        %v355 = vld [vmem:[%s169 + $0x13] sm:$0x1]
        %v356 = vld [vmem:[%s169 + $0x23] sm:$0x1]
        %v357 = vld [vmem:[%s169 + $0x33] sm:$0x1]
        %v362 = vrot.slane %v347, 7
        %v363 = vsel %vm213, %v362, %v346
        %v364 = vrot.slane %v348, 6
        %v365 = vsel %vm216, %v364, %v363
        %v366 = vrot.slane %v349, 5
        %v367 = vsel %vm219, %v366, %v365
        %v369 = vrot.slane %v346, 4
        %v370 = vrot.slane %v347, 3
        %v371 = vsel %vm224, %v370, %v369
        %v372 = vrot.slane %v348, 2
        %v373 = vsel %vm227, %v372, %v371
        %v374 = vrot.slane %v349, 1
        %v375 = vsel %vm230, %v374, %v373
        %376 = vrot.lane.b32.xlu0 %v375, 127
        %v377 = vpop.permute.xlu0 %376
        %379 = vrot.lane.b32.xlu0 %v367, 126
        %v380 = vpop.permute.xlu0 %379
        %v386 = vrot.slane %v350, 4
        %v387 = vrot.slane %v351, 3
        %v388 = vsel %vm224, %v387, %v386
        %v389 = vrot.slane %v352, 2
        %v390 = vsel %vm227, %v389, %v388
        %v391 = vrot.slane %v353, 1
        %v392 = vsel %vm230, %v391, %v390
        %v394 = vrot.slane %v351, 7
        %v395 = vsel %vm213, %v394, %v350
        %v396 = vrot.slane %v352, 6
        %v397 = vsel %vm216, %v396, %v395
        %v398 = vrot.slane %v353, 5
        %v399 = vsel %vm219, %v398, %v397
        %400 = vrot.lane.b32.xlu0 %v399, 127
        %v401 = vpop.permute.xlu0 %400
        %403 = vrot.lane.b32.xlu0 %v392, 126
        %v404 = vpop.permute.xlu0 %403
        %v410 = vrot.slane %v355, 7
        %v411 = vsel %vm213, %v410, %v354
        %v412 = vrot.slane %v356, 6
        %v413 = vsel %vm216, %v412, %v411
        %v414 = vrot.slane %v357, 5
        %v415 = vsel %vm219, %v414, %v413
        %v417 = vrot.slane %v354, 4
        %v418 = vrot.slane %v355, 3
        %v419 = vsel %vm224, %v418, %v417
        %v420 = vrot.slane %v356, 2
        %v421 = vsel %vm227, %v420, %v419
        %v422 = vrot.slane %v357, 1
        %v423 = vsel %vm230, %v422, %v421
        %424 = vrot.lane.b32.xlu0 %v423, 127
        %v425 = vpop.permute.xlu0 %424
        %427 = vrot.lane.b32.xlu0 %v415, 126
        %v428 = vpop.permute.xlu0 %427
        %v430 = vsel %vm286, %v367, %v377
        %v431 = vsel %vm286, %v380, %v392
        %v432 = vsel %vm286, %v401, %v404
        %v433 = vsel %vm286, %v415, %v425
        %v434 = vsel %vm286, %v428, 1.0
        %v436 = vsel %vm296, %v434, 0
        %438 = vmatpush.msra.mxu0 0.0
        %439 = vmatpush.msra.mxu0 0.0
        %440 = vmatpush.msra.mxu0 0.0
        %441 = vmatpush.msra.mxu0 0.0
        %442 = vmatpush.msra.mxu0 0.0
        %443 = vmatpush.msra.mxu0 0.0
        %444 = vmatpush.msra.mxu0 0.0
        %445 = vmatpush.msra.mxu0 0.0
        %446 = vmatpush.msra.mxu0 0.0
        %447 = vmatpush.msra.mxu0 0.0
        %448 = vmatpush.msra.mxu0 0.0
        %449 = vmatpush.msra.mxu0 %v436
        %450 = vmatpush.msra.mxu0 %v433
        %451 = vmatpush.msra.mxu0 %v432
        %452 = vmatpush.msra.mxu0 %v431
        %453 = vmatpush.msra.mxu0 %v430
        %454 = vmatmul.f32.gmra.mxu0 %v294
        %v455 = vpop.f32.mrf.mxu0
        %v456 = vadd.f32 0.0, %v455
        %457 = vdwg.mxu0
        %v458 = vmax.f32 %v456, 0.0
        %v460 = vrot.slane %v458, 1
        %v461 = vrot.slane %v458, 2
        %v462 = vrot.slane %v458, 3
        %v463 = vrot.slane %v458, 4
        %v464 = vrot.slane %v458, 5
        %v465 = vrot.slane %v458, 6
        %v466 = vrot.slane %v458, 7
        %474 = vst.msk [vmem:[%s336 + $0x1] sm:$0x1] %vm337, %v458
        %475 = vst.msk [vmem:[%s336 + $0x9] sm:$0x1] %vm337, %v460
        %476 = vst.msk [vmem:[%s336 + $0x11] sm:$0x1] %vm337, %v461
        %477 = vst.msk [vmem:[%s336 + $0x19] sm:$0x1] %vm337, %v462
        %478 = vst.msk [vmem:[%s336 + $0x21] sm:$0x1] %vm337, %v463
        %479 = vst.msk [vmem:[%s336 + $0x29] sm:$0x1] %vm337, %v464
        %480 = vst.msk [vmem:[%s336 + $0x31] sm:$0x1] %vm337, %v465
        %481 = vst.msk [vmem:[%s336 + $0x39] sm:$0x1] %vm337, %v466
        %v482 = vld [vmem:[%s169 + $0x2] sm:$0x1]
        %v483 = vld [vmem:[%s169 + $0x12] sm:$0x1]
        %v484 = vld [vmem:[%s169 + $0x22] sm:$0x1]
        %v485 = vld [vmem:[%s169 + $0x32] sm:$0x1]
        %v486 = vld [vmem:[%s169 + $0x3] sm:$0x1]
        %v487 = vld [vmem:[%s169 + $0x13] sm:$0x1]
        %v488 = vld [vmem:[%s169 + $0x23] sm:$0x1]
        %v489 = vld [vmem:[%s169 + $0x33] sm:$0x1]
        %v490 = vld [vmem:[%s169 + $0x4] sm:$0x1]
        %v491 = vld [vmem:[%s169 + $0x14] sm:$0x1]
        %v492 = vld [vmem:[%s169 + $0x24] sm:$0x1]
        %v493 = vld [vmem:[%s169 + $0x34] sm:$0x1]
        %v498 = vrot.slane %v483, 7
        %v499 = vsel %vm213, %v498, %v482
        %v500 = vrot.slane %v484, 6
        %v501 = vsel %vm216, %v500, %v499
        %v502 = vrot.slane %v485, 5
        %v503 = vsel %vm219, %v502, %v501
        %v505 = vrot.slane %v482, 4
        %v506 = vrot.slane %v483, 3
        %v507 = vsel %vm224, %v506, %v505
        %v508 = vrot.slane %v484, 2
        %v509 = vsel %vm227, %v508, %v507
        %v510 = vrot.slane %v485, 1
        %v511 = vsel %vm230, %v510, %v509
        %512 = vrot.lane.b32.xlu0 %v511, 127
        %v513 = vpop.permute.xlu0 %512
        %515 = vrot.lane.b32.xlu0 %v503, 126
        %v516 = vpop.permute.xlu0 %515
        %v522 = vrot.slane %v486, 4
        %v523 = vrot.slane %v487, 3
        %v524 = vsel %vm224, %v523, %v522
        %v525 = vrot.slane %v488, 2
        %v526 = vsel %vm227, %v525, %v524
        %v527 = vrot.slane %v489, 1
        %v528 = vsel %vm230, %v527, %v526
        %v530 = vrot.slane %v487, 7
        %v531 = vsel %vm213, %v530, %v486
        %v532 = vrot.slane %v488, 6
        %v533 = vsel %vm216, %v532, %v531
        %v534 = vrot.slane %v489, 5
        %v535 = vsel %vm219, %v534, %v533
        %536 = vrot.lane.b32.xlu0 %v535, 127
        %v537 = vpop.permute.xlu0 %536
        %539 = vrot.lane.b32.xlu0 %v528, 126
        %v540 = vpop.permute.xlu0 %539
        %v546 = vrot.slane %v491, 7
        %v547 = vsel %vm213, %v546, %v490
        %v548 = vrot.slane %v492, 6
        %v549 = vsel %vm216, %v548, %v547
        %v550 = vrot.slane %v493, 5
        %v551 = vsel %vm219, %v550, %v549
        %v553 = vrot.slane %v490, 4
        %v554 = vrot.slane %v491, 3
        %v555 = vsel %vm224, %v554, %v553
        %v556 = vrot.slane %v492, 2
        %v557 = vsel %vm227, %v556, %v555
        %v558 = vrot.slane %v493, 1
        %v559 = vsel %vm230, %v558, %v557
        %560 = vrot.lane.b32.xlu0 %v559, 127
        %v561 = vpop.permute.xlu0 %560
        %563 = vrot.lane.b32.xlu0 %v551, 126
        %v564 = vpop.permute.xlu0 %563
        %v566 = vsel %vm286, %v503, %v513
        %v567 = vsel %vm286, %v516, %v528
        %v568 = vsel %vm286, %v537, %v540
        %v569 = vsel %vm286, %v551, %v561
        %v570 = vsel %vm286, %v564, 1.0
        %v572 = vsel %vm296, %v570, 0
        %574 = vmatpush.msra.mxu0 0.0
        %575 = vmatpush.msra.mxu0 0.0
        %576 = vmatpush.msra.mxu0 0.0
        %577 = vmatpush.msra.mxu0 0.0
        %578 = vmatpush.msra.mxu0 0.0
        %579 = vmatpush.msra.mxu0 0.0
        %580 = vmatpush.msra.mxu0 0.0
        %581 = vmatpush.msra.mxu0 0.0
        %582 = vmatpush.msra.mxu0 0.0
        %583 = vmatpush.msra.mxu0 0.0
        %584 = vmatpush.msra.mxu0 0.0
        %585 = vmatpush.msra.mxu0 %v572
        %586 = vmatpush.msra.mxu0 %v569
        %587 = vmatpush.msra.mxu0 %v568
        %588 = vmatpush.msra.mxu0 %v567
        %589 = vmatpush.msra.mxu0 %v566
        %590 = vmatmul.f32.gmra.mxu0 %v294
        %v591 = vpop.f32.mrf.mxu0
        %v592 = vadd.f32 0.0, %v591
        %593 = vdwg.mxu0
        %v594 = vmax.f32 %v592, 0.0
        %v596 = vrot.slane %v594, 1
        %v597 = vrot.slane %v594, 2
        %v598 = vrot.slane %v594, 3
        %v599 = vrot.slane %v594, 4
        %v600 = vrot.slane %v594, 5
        %v601 = vrot.slane %v594, 6
        %v602 = vrot.slane %v594, 7
        %610 = vst.msk [vmem:[%s336 + $0x2] sm:$0x1] %vm337, %v594
        %611 = vst.msk [vmem:[%s336 + $0xa] sm:$0x1] %vm337, %v596
        %612 = vst.msk [vmem:[%s336 + $0x12] sm:$0x1] %vm337, %v597
        %613 = vst.msk [vmem:[%s336 + $0x1a] sm:$0x1] %vm337, %v598
        %614 = vst.msk [vmem:[%s336 + $0x22] sm:$0x1] %vm337, %v599
        %615 = vst.msk [vmem:[%s336 + $0x2a] sm:$0x1] %vm337, %v600
        %616 = vst.msk [vmem:[%s336 + $0x32] sm:$0x1] %vm337, %v601
        %617 = vst.msk [vmem:[%s336 + $0x3a] sm:$0x1] %vm337, %v602
        %v618 = vld [vmem:[%s169 + $0x3] sm:$0x1]
        %v619 = vld [vmem:[%s169 + $0x13] sm:$0x1]
        %v620 = vld [vmem:[%s169 + $0x23] sm:$0x1]
        %v621 = vld [vmem:[%s169 + $0x33] sm:$0x1]
        %v622 = vld [vmem:[%s169 + $0x4] sm:$0x1]
        %v623 = vld [vmem:[%s169 + $0x14] sm:$0x1]
        %v624 = vld [vmem:[%s169 + $0x24] sm:$0x1]
        %v625 = vld [vmem:[%s169 + $0x34] sm:$0x1]
        %v626 = vld [vmem:[%s169 + $0x5] sm:$0x1]
        %v627 = vld [vmem:[%s169 + $0x15] sm:$0x1]
        %v628 = vld [vmem:[%s169 + $0x25] sm:$0x1]
        %v629 = vld [vmem:[%s169 + $0x35] sm:$0x1]
        %v634 = vrot.slane %v619, 7
        %v635 = vsel %vm213, %v634, %v618
        %v636 = vrot.slane %v620, 6
        %v637 = vsel %vm216, %v636, %v635
        %v638 = vrot.slane %v621, 5
        %v639 = vsel %vm219, %v638, %v637
        %v641 = vrot.slane %v618, 4
        %v642 = vrot.slane %v619, 3
        %v643 = vsel %vm224, %v642, %v641
        %v644 = vrot.slane %v620, 2
        %v645 = vsel %vm227, %v644, %v643
        %v646 = vrot.slane %v621, 1
        %v647 = vsel %vm230, %v646, %v645
        %648 = vrot.lane.b32.xlu0 %v647, 127
        %v649 = vpop.permute.xlu0 %648
        %651 = vrot.lane.b32.xlu0 %v639, 126
        %v652 = vpop.permute.xlu0 %651
        %v658 = vrot.slane %v622, 4
        %v659 = vrot.slane %v623, 3
        %v660 = vsel %vm224, %v659, %v658
        %v661 = vrot.slane %v624, 2
        %v662 = vsel %vm227, %v661, %v660
        %v663 = vrot.slane %v625, 1
        %v664 = vsel %vm230, %v663, %v662
        %v666 = vrot.slane %v623, 7
        %v667 = vsel %vm213, %v666, %v622
        %v668 = vrot.slane %v624, 6
        %v669 = vsel %vm216, %v668, %v667
        %v670 = vrot.slane %v625, 5
        %v671 = vsel %vm219, %v670, %v669
        %672 = vrot.lane.b32.xlu0 %v671, 127
        %v673 = vpop.permute.xlu0 %672
        %675 = vrot.lane.b32.xlu0 %v664, 126
        %v676 = vpop.permute.xlu0 %675
        %v682 = vrot.slane %v627, 7
        %v683 = vsel %vm213, %v682, %v626
        %v684 = vrot.slane %v628, 6
        %v685 = vsel %vm216, %v684, %v683
        %v686 = vrot.slane %v629, 5
        %v687 = vsel %vm219, %v686, %v685
        %v689 = vrot.slane %v626, 4
        %v690 = vrot.slane %v627, 3
        %v691 = vsel %vm224, %v690, %v689
        %v692 = vrot.slane %v628, 2
        %v693 = vsel %vm227, %v692, %v691
        %v694 = vrot.slane %v629, 1
        %v695 = vsel %vm230, %v694, %v693
        %696 = vrot.lane.b32.xlu0 %v695, 127
        %v697 = vpop.permute.xlu0 %696
        %699 = vrot.lane.b32.xlu0 %v687, 126
        %v700 = vpop.permute.xlu0 %699
        %v702 = vsel %vm286, %v639, %v649
        %v703 = vsel %vm286, %v652, %v664
        %v704 = vsel %vm286, %v673, %v676
        %v705 = vsel %vm286, %v687, %v697
        %v706 = vsel %vm286, %v700, 1.0
        %v708 = vsel %vm296, %v706, 0
        %710 = vmatpush.msra.mxu0 0.0
        %711 = vmatpush.msra.mxu0 0.0
        %712 = vmatpush.msra.mxu0 0.0
        %713 = vmatpush.msra.mxu0 0.0
        %714 = vmatpush.msra.mxu0 0.0
        %715 = vmatpush.msra.mxu0 0.0
        %716 = vmatpush.msra.mxu0 0.0
        %717 = vmatpush.msra.mxu0 0.0
        %718 = vmatpush.msra.mxu0 0.0
        %719 = vmatpush.msra.mxu0 0.0
        %720 = vmatpush.msra.mxu0 0.0
        %721 = vmatpush.msra.mxu0 %v708
        %722 = vmatpush.msra.mxu0 %v705
        %723 = vmatpush.msra.mxu0 %v704
        %724 = vmatpush.msra.mxu0 %v703
        %725 = vmatpush.msra.mxu0 %v702
        %726 = vmatmul.f32.gmra.mxu0 %v294
        %v727 = vpop.f32.mrf.mxu0
        %v728 = vadd.f32 0.0, %v727
        %729 = vdwg.mxu0
        %v730 = vmax.f32 %v728, 0.0
        %v732 = vrot.slane %v730, 1
        %v733 = vrot.slane %v730, 2
        %v734 = vrot.slane %v730, 3
        %v735 = vrot.slane %v730, 4
        %v736 = vrot.slane %v730, 5
        %v737 = vrot.slane %v730, 6
        %v738 = vrot.slane %v730, 7
        %746 = vst.msk [vmem:[%s336 + $0x3] sm:$0x1] %vm337, %v730
        %747 = vst.msk [vmem:[%s336 + $0xb] sm:$0x1] %vm337, %v732
        %748 = vst.msk [vmem:[%s336 + $0x13] sm:$0x1] %vm337, %v733
        %749 = vst.msk [vmem:[%s336 + $0x1b] sm:$0x1] %vm337, %v734
        %750 = vst.msk [vmem:[%s336 + $0x23] sm:$0x1] %vm337, %v735
        %751 = vst.msk [vmem:[%s336 + $0x2b] sm:$0x1] %vm337, %v736
        %752 = vst.msk [vmem:[%s336 + $0x33] sm:$0x1] %vm337, %v737
        %753 = vst.msk [vmem:[%s336 + $0x3b] sm:$0x1] %vm337, %v738
        %v754 = vld [vmem:[%s169 + $0x4] sm:$0x1]
        %v755 = vld [vmem:[%s169 + $0x14] sm:$0x1]
        %v756 = vld [vmem:[%s169 + $0x24] sm:$0x1]
        %v757 = vld [vmem:[%s169 + $0x34] sm:$0x1]
        %v758 = vld [vmem:[%s169 + $0x5] sm:$0x1]
        %v759 = vld [vmem:[%s169 + $0x15] sm:$0x1]
        %v760 = vld [vmem:[%s169 + $0x25] sm:$0x1]
        %v761 = vld [vmem:[%s169 + $0x35] sm:$0x1]
        %v762 = vld [vmem:[%s169 + $0x6] sm:$0x1]
        %v763 = vld [vmem:[%s169 + $0x16] sm:$0x1]
        %v764 = vld [vmem:[%s169 + $0x26] sm:$0x1]
        %v765 = vld [vmem:[%s169 + $0x36] sm:$0x1]
        %v770 = vrot.slane %v755, 7
        %v771 = vsel %vm213, %v770, %v754
        %v772 = vrot.slane %v756, 6
        %v773 = vsel %vm216, %v772, %v771
        %v774 = vrot.slane %v757, 5
        %v775 = vsel %vm219, %v774, %v773
        %v777 = vrot.slane %v754, 4
        %v778 = vrot.slane %v755, 3
        %v779 = vsel %vm224, %v778, %v777
        %v780 = vrot.slane %v756, 2
        %v781 = vsel %vm227, %v780, %v779
        %v782 = vrot.slane %v757, 1
        %v783 = vsel %vm230, %v782, %v781
        %784 = vrot.lane.b32.xlu0 %v783, 127
        %v785 = vpop.permute.xlu0 %784
        %787 = vrot.lane.b32.xlu0 %v775, 126
        %v788 = vpop.permute.xlu0 %787
        %v794 = vrot.slane %v758, 4
        %v795 = vrot.slane %v759, 3
        %v796 = vsel %vm224, %v795, %v794
        %v797 = vrot.slane %v760, 2
        %v798 = vsel %vm227, %v797, %v796
        %v799 = vrot.slane %v761, 1
        %v800 = vsel %vm230, %v799, %v798
        %v802 = vrot.slane %v759, 7
        %v803 = vsel %vm213, %v802, %v758
        %v804 = vrot.slane %v760, 6
        %v805 = vsel %vm216, %v804, %v803
        %v806 = vrot.slane %v761, 5
        %v807 = vsel %vm219, %v806, %v805
        %808 = vrot.lane.b32.xlu0 %v807, 127
        %v809 = vpop.permute.xlu0 %808
        %811 = vrot.lane.b32.xlu0 %v800, 126
        %v812 = vpop.permute.xlu0 %811
        %v818 = vrot.slane %v763, 7
        %v819 = vsel %vm213, %v818, %v762
        %v820 = vrot.slane %v764, 6
        %v821 = vsel %vm216, %v820, %v819
        %v822 = vrot.slane %v765, 5
        %v823 = vsel %vm219, %v822, %v821
        %v825 = vrot.slane %v762, 4
        %v826 = vrot.slane %v763, 3
        %v827 = vsel %vm224, %v826, %v825
        %v828 = vrot.slane %v764, 2
        %v829 = vsel %vm227, %v828, %v827
        %v830 = vrot.slane %v765, 1
        %v831 = vsel %vm230, %v830, %v829
        %832 = vrot.lane.b32.xlu0 %v831, 127
        %v833 = vpop.permute.xlu0 %832
        %835 = vrot.lane.b32.xlu0 %v823, 126
        %v836 = vpop.permute.xlu0 %835
        %v838 = vsel %vm286, %v775, %v785
        %v839 = vsel %vm286, %v788, %v800
        %v840 = vsel %vm286, %v809, %v812
        %v841 = vsel %vm286, %v823, %v833
        %v842 = vsel %vm286, %v836, 1.0
        %v844 = vsel %vm296, %v842, 0
        %846 = vmatpush.msra.mxu0 0.0
        %847 = vmatpush.msra.mxu0 0.0
        %848 = vmatpush.msra.mxu0 0.0
        %849 = vmatpush.msra.mxu0 0.0
        %850 = vmatpush.msra.mxu0 0.0
        %851 = vmatpush.msra.mxu0 0.0
        %852 = vmatpush.msra.mxu0 0.0
        %853 = vmatpush.msra.mxu0 0.0
        %854 = vmatpush.msra.mxu0 0.0
        %855 = vmatpush.msra.mxu0 0.0
        %856 = vmatpush.msra.mxu0 0.0
        %857 = vmatpush.msra.mxu0 %v844
        %858 = vmatpush.msra.mxu0 %v841
        %859 = vmatpush.msra.mxu0 %v840
        %860 = vmatpush.msra.mxu0 %v839
        %861 = vmatpush.msra.mxu0 %v838
        %862 = vmatmul.f32.gmra.mxu0 %v294
        %v863 = vpop.f32.mrf.mxu0
        %v864 = vadd.f32 0.0, %v863
        %865 = vdwg.mxu0
        %v866 = vmax.f32 %v864, 0.0
        %v868 = vrot.slane %v866, 1
        %v869 = vrot.slane %v866, 2
        %v870 = vrot.slane %v866, 3
        %v871 = vrot.slane %v866, 4
        %v872 = vrot.slane %v866, 5
        %v873 = vrot.slane %v866, 6
        %v874 = vrot.slane %v866, 7
        %882 = vst.msk [vmem:[%s336 + $0x4] sm:$0x1] %vm337, %v866
        %883 = vst.msk [vmem:[%s336 + $0xc] sm:$0x1] %vm337, %v868
        %884 = vst.msk [vmem:[%s336 + $0x14] sm:$0x1] %vm337, %v869
        %885 = vst.msk [vmem:[%s336 + $0x1c] sm:$0x1] %vm337, %v870
        %886 = vst.msk [vmem:[%s336 + $0x24] sm:$0x1] %vm337, %v871
        %887 = vst.msk [vmem:[%s336 + $0x2c] sm:$0x1] %vm337, %v872
        %888 = vst.msk [vmem:[%s336 + $0x34] sm:$0x1] %vm337, %v873
        %889 = vst.msk [vmem:[%s336 + $0x3c] sm:$0x1] %vm337, %v874
        %v890 = vld [vmem:[%s169 + $0x5] sm:$0x1]
        %v891 = vld [vmem:[%s169 + $0x15] sm:$0x1]
        %v892 = vld [vmem:[%s169 + $0x25] sm:$0x1]
        %v893 = vld [vmem:[%s169 + $0x35] sm:$0x1]
        %v894 = vld [vmem:[%s169 + $0x6] sm:$0x1]
        %v895 = vld [vmem:[%s169 + $0x16] sm:$0x1]
        %v896 = vld [vmem:[%s169 + $0x26] sm:$0x1]
        %v897 = vld [vmem:[%s169 + $0x36] sm:$0x1]
        %v898 = vld [vmem:[%s169 + $0x7] sm:$0x1]
        %v899 = vld [vmem:[%s169 + $0x17] sm:$0x1]
        %v900 = vld [vmem:[%s169 + $0x27] sm:$0x1]
        %v901 = vld [vmem:[%s169 + $0x37] sm:$0x1]
        %v906 = vrot.slane %v891, 7
        %v907 = vsel %vm213, %v906, %v890
        %v908 = vrot.slane %v892, 6
        %v909 = vsel %vm216, %v908, %v907
        %v910 = vrot.slane %v893, 5
        %v911 = vsel %vm219, %v910, %v909
        %v913 = vrot.slane %v890, 4
        %v914 = vrot.slane %v891, 3
        %v915 = vsel %vm224, %v914, %v913
        %v916 = vrot.slane %v892, 2
        %v917 = vsel %vm227, %v916, %v915
        %v918 = vrot.slane %v893, 1
        %v919 = vsel %vm230, %v918, %v917
        %920 = vrot.lane.b32.xlu0 %v919, 127
        %v921 = vpop.permute.xlu0 %920
        %923 = vrot.lane.b32.xlu0 %v911, 126
        %v924 = vpop.permute.xlu0 %923
        %v930 = vrot.slane %v894, 4
        %v931 = vrot.slane %v895, 3
        %v932 = vsel %vm224, %v931, %v930
        %v933 = vrot.slane %v896, 2
        %v934 = vsel %vm227, %v933, %v932
        %v935 = vrot.slane %v897, 1
        %v936 = vsel %vm230, %v935, %v934
        %v938 = vrot.slane %v895, 7
        %v939 = vsel %vm213, %v938, %v894
        %v940 = vrot.slane %v896, 6
        %v941 = vsel %vm216, %v940, %v939
        %v942 = vrot.slane %v897, 5
        %v943 = vsel %vm219, %v942, %v941
        %944 = vrot.lane.b32.xlu0 %v943, 127
        %v945 = vpop.permute.xlu0 %944
        %947 = vrot.lane.b32.xlu0 %v936, 126
        %v948 = vpop.permute.xlu0 %947
        %v954 = vrot.slane %v899, 7
        %v955 = vsel %vm213, %v954, %v898
        %v956 = vrot.slane %v900, 6
        %v957 = vsel %vm216, %v956, %v955
        %v958 = vrot.slane %v901, 5
        %v959 = vsel %vm219, %v958, %v957
        %v961 = vrot.slane %v898, 4
        %v962 = vrot.slane %v899, 3
        %v963 = vsel %vm224, %v962, %v961
        %v964 = vrot.slane %v900, 2
        %v965 = vsel %vm227, %v964, %v963
        %v966 = vrot.slane %v901, 1
        %v967 = vsel %vm230, %v966, %v965
        %968 = vrot.lane.b32.xlu0 %v967, 127
        %v969 = vpop.permute.xlu0 %968
        %971 = vrot.lane.b32.xlu0 %v959, 126
        %v972 = vpop.permute.xlu0 %971
        %v974 = vsel %vm286, %v911, %v921
        %v975 = vsel %vm286, %v924, %v936
        %v976 = vsel %vm286, %v945, %v948
        %v977 = vsel %vm286, %v959, %v969
        %v978 = vsel %vm286, %v972, 1.0
        %v980 = vsel %vm296, %v978, 0
        %982 = vmatpush.msra.mxu0 0.0
        %983 = vmatpush.msra.mxu0 0.0
        %984 = vmatpush.msra.mxu0 0.0
        %985 = vmatpush.msra.mxu0 0.0
        %986 = vmatpush.msra.mxu0 0.0
        %987 = vmatpush.msra.mxu0 0.0
        %988 = vmatpush.msra.mxu0 0.0
        %989 = vmatpush.msra.mxu0 0.0
        %990 = vmatpush.msra.mxu0 0.0
        %991 = vmatpush.msra.mxu0 0.0
        %992 = vmatpush.msra.mxu0 0.0
        %993 = vmatpush.msra.mxu0 %v980
        %994 = vmatpush.msra.mxu0 %v977
        %995 = vmatpush.msra.mxu0 %v976
        %996 = vmatpush.msra.mxu0 %v975
        %997 = vmatpush.msra.mxu0 %v974
        %998 = vmatmul.f32.gmra.mxu0 %v294
        %v999 = vpop.f32.mrf.mxu0
        %v1000 = vadd.f32 0.0, %v999
        %1001 = vdwg.mxu0
        %v1002 = vmax.f32 %v1000, 0.0
        %v1004 = vrot.slane %v1002, 1
        %v1005 = vrot.slane %v1002, 2
        %v1006 = vrot.slane %v1002, 3
        %v1007 = vrot.slane %v1002, 4
        %v1008 = vrot.slane %v1002, 5
        %v1009 = vrot.slane %v1002, 6
        %v1010 = vrot.slane %v1002, 7
        %1018 = vst.msk [vmem:[%s336 + $0x5] sm:$0x1] %vm337, %v1002
        %1019 = vst.msk [vmem:[%s336 + $0xd] sm:$0x1] %vm337, %v1004
        %1020 = vst.msk [vmem:[%s336 + $0x15] sm:$0x1] %vm337, %v1005
        %1021 = vst.msk [vmem:[%s336 + $0x1d] sm:$0x1] %vm337, %v1006
        %1022 = vst.msk [vmem:[%s336 + $0x25] sm:$0x1] %vm337, %v1007
        %1023 = vst.msk [vmem:[%s336 + $0x2d] sm:$0x1] %vm337, %v1008
        %1024 = vst.msk [vmem:[%s336 + $0x35] sm:$0x1] %vm337, %v1009
        %1025 = vst.msk [vmem:[%s336 + $0x3d] sm:$0x1] %vm337, %v1010
        %v1026 = vld [vmem:[%s169 + $0x6] sm:$0x1]
        %v1027 = vld [vmem:[%s169 + $0x16] sm:$0x1]
        %v1028 = vld [vmem:[%s169 + $0x26] sm:$0x1]
        %v1029 = vld [vmem:[%s169 + $0x36] sm:$0x1]
        %v1030 = vld [vmem:[%s169 + $0x7] sm:$0x1]
        %v1031 = vld [vmem:[%s169 + $0x17] sm:$0x1]
        %v1032 = vld [vmem:[%s169 + $0x27] sm:$0x1]
        %v1033 = vld [vmem:[%s169 + $0x37] sm:$0x1]
        %v1034 = vld [vmem:[%s169 + $0x8] sm:$0x1]
        %v1035 = vld [vmem:[%s169 + $0x18] sm:$0x1]
        %v1036 = vld [vmem:[%s169 + $0x28] sm:$0x1]
        %v1037 = vld [vmem:[%s169 + $0x38] sm:$0x1]
        %v1042 = vrot.slane %v1027, 7
        %v1043 = vsel %vm213, %v1042, %v1026
        %v1044 = vrot.slane %v1028, 6
        %v1045 = vsel %vm216, %v1044, %v1043
        %v1046 = vrot.slane %v1029, 5
        %v1047 = vsel %vm219, %v1046, %v1045
        %v1049 = vrot.slane %v1026, 4
        %v1050 = vrot.slane %v1027, 3
        %v1051 = vsel %vm224, %v1050, %v1049
        %v1052 = vrot.slane %v1028, 2
        %v1053 = vsel %vm227, %v1052, %v1051
        %v1054 = vrot.slane %v1029, 1
        %v1055 = vsel %vm230, %v1054, %v1053
        %1056 = vrot.lane.b32.xlu0 %v1055, 127
        %v1057 = vpop.permute.xlu0 %1056
        %1059 = vrot.lane.b32.xlu0 %v1047, 126
        %v1060 = vpop.permute.xlu0 %1059
        %v1066 = vrot.slane %v1030, 4
        %v1067 = vrot.slane %v1031, 3
        %v1068 = vsel %vm224, %v1067, %v1066
        %v1069 = vrot.slane %v1032, 2
        %v1070 = vsel %vm227, %v1069, %v1068
        %v1071 = vrot.slane %v1033, 1
        %v1072 = vsel %vm230, %v1071, %v1070
        %v1074 = vrot.slane %v1031, 7
        %v1075 = vsel %vm213, %v1074, %v1030
        %v1076 = vrot.slane %v1032, 6
        %v1077 = vsel %vm216, %v1076, %v1075
        %v1078 = vrot.slane %v1033, 5
        %v1079 = vsel %vm219, %v1078, %v1077
        %1080 = vrot.lane.b32.xlu0 %v1079, 127
        %v1081 = vpop.permute.xlu0 %1080
        %1083 = vrot.lane.b32.xlu0 %v1072, 126
        %v1084 = vpop.permute.xlu0 %1083
        %v1090 = vrot.slane %v1035, 7
        %v1091 = vsel %vm213, %v1090, %v1034
        %v1092 = vrot.slane %v1036, 6
        %v1093 = vsel %vm216, %v1092, %v1091
        %v1094 = vrot.slane %v1037, 5
        %v1095 = vsel %vm219, %v1094, %v1093
        %v1097 = vrot.slane %v1034, 4
        %v1098 = vrot.slane %v1035, 3
        %v1099 = vsel %vm224, %v1098, %v1097
        %v1100 = vrot.slane %v1036, 2
        %v1101 = vsel %vm227, %v1100, %v1099
        %v1102 = vrot.slane %v1037, 1
        %v1103 = vsel %vm230, %v1102, %v1101
        %1104 = vrot.lane.b32.xlu0 %v1103, 127
        %v1105 = vpop.permute.xlu0 %1104
        %1107 = vrot.lane.b32.xlu0 %v1095, 126
        %v1108 = vpop.permute.xlu0 %1107
        %v1110 = vsel %vm286, %v1047, %v1057
        %v1111 = vsel %vm286, %v1060, %v1072
        %v1112 = vsel %vm286, %v1081, %v1084
        %v1113 = vsel %vm286, %v1095, %v1105
        %v1114 = vsel %vm286, %v1108, 1.0
        %v1116 = vsel %vm296, %v1114, 0
        %1118 = vmatpush.msra.mxu0 0.0
        %1119 = vmatpush.msra.mxu0 0.0
        %1120 = vmatpush.msra.mxu0 0.0
        %1121 = vmatpush.msra.mxu0 0.0
        %1122 = vmatpush.msra.mxu0 0.0
        %1123 = vmatpush.msra.mxu0 0.0
        %1124 = vmatpush.msra.mxu0 0.0
        %1125 = vmatpush.msra.mxu0 0.0
        %1126 = vmatpush.msra.mxu0 0.0
        %1127 = vmatpush.msra.mxu0 0.0
        %1128 = vmatpush.msra.mxu0 0.0
        %1129 = vmatpush.msra.mxu0 %v1116
        %1130 = vmatpush.msra.mxu0 %v1113
        %1131 = vmatpush.msra.mxu0 %v1112
        %1132 = vmatpush.msra.mxu0 %v1111
        %1133 = vmatpush.msra.mxu0 %v1110
        %1134 = vmatmul.f32.gmra.mxu0 %v294
        %v1135 = vpop.f32.mrf.mxu0
        %v1136 = vadd.f32 0.0, %v1135
        %1137 = vdwg.mxu0
        %v1138 = vmax.f32 %v1136, 0.0
        %v1140 = vrot.slane %v1138, 1
        %v1141 = vrot.slane %v1138, 2
        %v1142 = vrot.slane %v1138, 3
        %v1143 = vrot.slane %v1138, 4
        %v1144 = vrot.slane %v1138, 5
        %v1145 = vrot.slane %v1138, 6
        %v1146 = vrot.slane %v1138, 7
        %1154 = vst.msk [vmem:[%s336 + $0x6] sm:$0x1] %vm337, %v1138
        %1155 = vst.msk [vmem:[%s336 + $0xe] sm:$0x1] %vm337, %v1140
        %1156 = vst.msk [vmem:[%s336 + $0x16] sm:$0x1] %vm337, %v1141
        %1157 = vst.msk [vmem:[%s336 + $0x1e] sm:$0x1] %vm337, %v1142
        %1158 = vst.msk [vmem:[%s336 + $0x26] sm:$0x1] %vm337, %v1143
        %1159 = vst.msk [vmem:[%s336 + $0x2e] sm:$0x1] %vm337, %v1144
        %1160 = vst.msk [vmem:[%s336 + $0x36] sm:$0x1] %vm337, %v1145
        %1161 = vst.msk [vmem:[%s336 + $0x3e] sm:$0x1] %vm337, %v1146
        %v1162 = vld [vmem:[%s169 + $0x7] sm:$0x1]
        %v1163 = vld [vmem:[%s169 + $0x17] sm:$0x1]
        %v1164 = vld [vmem:[%s169 + $0x27] sm:$0x1]
        %v1165 = vld [vmem:[%s169 + $0x37] sm:$0x1]
        %v1166 = vld [vmem:[%s169 + $0x8] sm:$0x1]
        %v1167 = vld [vmem:[%s169 + $0x18] sm:$0x1]
        %v1168 = vld [vmem:[%s169 + $0x28] sm:$0x1]
        %v1169 = vld [vmem:[%s169 + $0x38] sm:$0x1]
        %v1170 = vld [vmem:[%s169 + $0x9] sm:$0x1]
        %v1171 = vld [vmem:[%s169 + $0x19] sm:$0x1]
        %v1172 = vld [vmem:[%s169 + $0x29] sm:$0x1]
        %v1173 = vld [vmem:[%s169 + $0x39] sm:$0x1]
        %v1178 = vrot.slane %v1163, 7
        %v1179 = vsel %vm213, %v1178, %v1162
        %v1180 = vrot.slane %v1164, 6
        %v1181 = vsel %vm216, %v1180, %v1179
        %v1182 = vrot.slane %v1165, 5
        %v1183 = vsel %vm219, %v1182, %v1181
        %v1185 = vrot.slane %v1162, 4
        %v1186 = vrot.slane %v1163, 3
        %v1187 = vsel %vm224, %v1186, %v1185
        %v1188 = vrot.slane %v1164, 2
        %v1189 = vsel %vm227, %v1188, %v1187
        %v1190 = vrot.slane %v1165, 1
        %v1191 = vsel %vm230, %v1190, %v1189
        %1192 = vrot.lane.b32.xlu0 %v1191, 127
        %v1193 = vpop.permute.xlu0 %1192
        %1195 = vrot.lane.b32.xlu0 %v1183, 126
        %v1196 = vpop.permute.xlu0 %1195
        %v1202 = vrot.slane %v1166, 4
        %v1203 = vrot.slane %v1167, 3
        %v1204 = vsel %vm224, %v1203, %v1202
        %v1205 = vrot.slane %v1168, 2
        %v1206 = vsel %vm227, %v1205, %v1204
        %v1207 = vrot.slane %v1169, 1
        %v1208 = vsel %vm230, %v1207, %v1206
        %v1210 = vrot.slane %v1167, 7
        %v1211 = vsel %vm213, %v1210, %v1166
        %v1212 = vrot.slane %v1168, 6
        %v1213 = vsel %vm216, %v1212, %v1211
        %v1214 = vrot.slane %v1169, 5
        %v1215 = vsel %vm219, %v1214, %v1213
        %1216 = vrot.lane.b32.xlu0 %v1215, 127
        %v1217 = vpop.permute.xlu0 %1216
        %1219 = vrot.lane.b32.xlu0 %v1208, 126
        %v1220 = vpop.permute.xlu0 %1219
        %v1226 = vrot.slane %v1171, 7
        %v1227 = vsel %vm213, %v1226, %v1170
        %v1228 = vrot.slane %v1172, 6
        %v1229 = vsel %vm216, %v1228, %v1227
        %v1230 = vrot.slane %v1173, 5
        %v1231 = vsel %vm219, %v1230, %v1229
        %v1233 = vrot.slane %v1170, 4
        %v1234 = vrot.slane %v1171, 3
        %v1235 = vsel %vm224, %v1234, %v1233
        %v1236 = vrot.slane %v1172, 2
        %v1237 = vsel %vm227, %v1236, %v1235
        %v1238 = vrot.slane %v1173, 1
        %v1239 = vsel %vm230, %v1238, %v1237
        %1240 = vrot.lane.b32.xlu0 %v1239, 127
        %v1241 = vpop.permute.xlu0 %1240
        %1243 = vrot.lane.b32.xlu0 %v1231, 126
        %v1244 = vpop.permute.xlu0 %1243
        %v1246 = vsel %vm286, %v1183, %v1193
        %v1247 = vsel %vm286, %v1196, %v1208
        %v1248 = vsel %vm286, %v1217, %v1220
        %v1249 = vsel %vm286, %v1231, %v1241
        %v1250 = vsel %vm286, %v1244, 1.0
        %v1252 = vsel %vm296, %v1250, 0
        %1254 = vmatpush.msra.mxu0 0.0
        %1255 = vmatpush.msra.mxu0 0.0
        %1256 = vmatpush.msra.mxu0 0.0
        %1257 = vmatpush.msra.mxu0 0.0
        %1258 = vmatpush.msra.mxu0 0.0
        %1259 = vmatpush.msra.mxu0 0.0
        %1260 = vmatpush.msra.mxu0 0.0
        %1261 = vmatpush.msra.mxu0 0.0
        %1262 = vmatpush.msra.mxu0 0.0
        %1263 = vmatpush.msra.mxu0 0.0
        %1264 = vmatpush.msra.mxu0 0.0
        %1265 = vmatpush.msra.mxu0 %v1252
        %1266 = vmatpush.msra.mxu0 %v1249
        %1267 = vmatpush.msra.mxu0 %v1248
        %1268 = vmatpush.msra.mxu0 %v1247
        %1269 = vmatpush.msra.mxu0 %v1246
        %1270 = vmatmul.f32.gmra.mxu0 %v294
        %v1271 = vpop.f32.mrf.mxu0
        %v1272 = vadd.f32 0.0, %v1271
        %1273 = vdwg.mxu0
        %v1274 = vmax.f32 %v1272, 0.0
        %v1276 = vrot.slane %v1274, 1
        %v1277 = vrot.slane %v1274, 2
        %v1278 = vrot.slane %v1274, 3
        %v1279 = vrot.slane %v1274, 4
        %v1280 = vrot.slane %v1274, 5
        %v1281 = vrot.slane %v1274, 6
        %v1282 = vrot.slane %v1274, 7
        %1290 = vst.msk [vmem:[%s336 + $0x7] sm:$0x1] %vm337, %v1274
        %1291 = vst.msk [vmem:[%s336 + $0xf] sm:$0x1] %vm337, %v1276
        %1292 = vst.msk [vmem:[%s336 + $0x17] sm:$0x1] %vm337, %v1277
        %1293 = vst.msk [vmem:[%s336 + $0x1f] sm:$0x1] %vm337, %v1278
        %1294 = vst.msk [vmem:[%s336 + $0x27] sm:$0x1] %vm337, %v1279
        %1295 = vst.msk [vmem:[%s336 + $0x2f] sm:$0x1] %vm337, %v1280
        %1296 = vst.msk [vmem:[%s336 + $0x37] sm:$0x1] %vm337, %v1281
        %1297 = vst.msk [vmem:[%s336 + $0x3f] sm:$0x1] %vm337, %v1282
        %s1298 = sand.u32 %s87, 1
        %s1299 = scalar_lea.sflag [#allocation3], %s1298
        %s1300 = sand.u32 %s87, 1
        %s1301 = smul.addr %s1300, 96
        %s1302 = scalar_lea.vmem [#allocation2], %s1301
        // Predicated region
        $region29: #{setq_rdb_conv_in.1} parent=27 // pred_check
          %p1303 = pneg %p97
        $region30: #{setq_rdb_conv_in.1} parent=27 // pred_check_branch
          %1305 = sbr.rel (%p1303) target = $region32
        $region31: #{setq_rdb_conv_in.1} parent=27 // pred_region
          %1307 = vsyncadd %s1299, 0
          %s1308 = smul.addr %s20, 24
          %s1309 = sadd.s32 %s21, %s1308
          %s1310 = smul.addr %s1309, 8
          %s1311 = scalar_lea.hbm %s2, %s1310
          %s1312 = sshll.u32 %s1302, 4
          %s1313 = int_to_ptr.vmem [resolvable:$true] %s1312
          %s1314 = sshll.u32 %s1311, 4
          %s1315 = int_to_ptr.hbm [resolvable:$true] %s1314
          %1320 = dma.vmem_to_hbm [thread:$0]  %s1313, 1536, %s1315, %s1299, 128, 256, 8
        $region32: #{setq_rdb_conv_in.1} parent=27 // pred_fallthru
          _
      $region28: #{setq_rdb_conv_in.1} parent=5 // pred_fallthru
        _
      %p1321 = scmp.le.s32.totalorder 2, %s11
      // Predicated region
      $region33: #{setq_rdb_conv_in.1} parent=5 // pred_check
        %p1322 = pneg %p1321
      $region34: #{setq_rdb_conv_in.1} parent=5 // pred_check_branch
        %1324 = sbr.rel (%p1322) target = $region36
      $region35: #{setq_rdb_conv_in.1} parent=5 // pred_region
        %s1325 = ssub.s32 %s11, 2
        // Predicated region
        $region37: #{setq_rdb_conv_in.1} parent=35 // pred_check
          %p1326 = pneg %p103
        $region38: #{setq_rdb_conv_in.1} parent=35 // pred_check_branch
          %1328 = sbr.rel (%p1326) target = $region40
        $region39: #{setq_rdb_conv_in.1} parent=35 // pred_region
          %s1329 = sand.u32 %s88, 1
          %s1330 = scalar_lea.sflag [#allocation3], %s1329
          %s1331 = sand.u32 %s88, 1
          %s1332 = smul.addr %s1331, 96
          %s1333 = scalar_lea.vmem [#allocation2], %s1332
          %1335 = dma.done %s1330, 1536
        $region40: #{setq_rdb_conv_in.1} parent=35 // pred_fallthru
          _
      $region36: #{setq_rdb_conv_in.1} parent=5 // pred_fallthru
        _
    $region6: #{setq_rdb_conv_in.1} parent=1 // loop_footer
      %s15 = sadd.s32 1, %s11
    $region7: #{setq_rdb_conv_in.1} parent=1 // loop_footer_branch
      %10 = sbr.rel target = $region3
    $region8: #{setq_rdb_conv_in.1} parent=1 // loop_exit
      _
    %1336 = vsyncpa [#allocation3], 1
    %s1337 = scalar_lea.sflag [#allocation3], 1
    %1338 = vsyncpa %s1337, 1

</llo_original>
